<compile_context>
chip_gen: v7x
topology: tpu7x:2x2x1
jax: 0.10.0
libtpu: 0.0.40
codegen_flags: <defaults>
</compile_context>

<pallas_src>
import functools
import math

import jax
import jax.numpy as jnp
from jax.experimental import pallas as pl
from jax.experimental.pallas import tpu as pltpu


def _mha_kernel(q_ref, k_ref,
                wq_ref, bq_ref, wk_ref, bk_ref,
                wv_ref, bv_ref, wo_ref, bo_ref,
                p_ref, pt_ref, o_ref, *,
                bt, s, e, h, inv_sqrt_hidden):
    # Per grid step (Bt batch elements):
    #   q_ref  : (Bt, E)        k_ref : (Bt, S, E)
    #   w*_ref : (E, E) pre-transposed bf16 (y = x @ w + b), b*_ref : (1, E) f32
    #   p_ref  : (E, H) f32 head selector, pt_ref : (H, E) f32
    #   o_ref  : (Bt, E)
    f32 = jnp.float32
    bf16 = jnp.bfloat16

    # ---- projections (bf16 MXU inputs, f32 accumulation) -------------------
    q = q_ref[...].astype(bf16)                                           # (Bt, E)
    qp = jnp.dot(q, wq_ref[...], preferred_element_type=f32) + bq_ref[...]
    qp = qp * inv_sqrt_hidden                                             # fold 1/sqrt(hd)

    kflat = k_ref[...].reshape(bt * s, e).astype(bf16)                    # (Bt*S, E)
    kp = jnp.dot(kflat, wk_ref[...], preferred_element_type=f32) + bk_ref[...]
    vp = jnp.dot(kflat, wv_ref[...], preferred_element_type=f32) + bv_ref[...]
    # TODO(synk): when E % 128 == 0 the K/V projections could be fused into one
    # (Bt*S, E) @ (E, 2E) matmul with a lane-aligned split; E=32 here, so they
    # stay separate to avoid an unaligned lane slice.

    # ---- per-head scaled scores (softmax path stays f32) -------------------
    kp3 = kp.reshape(bt, s, e)
    vp3 = vp.reshape(bt, s, e)
    qk = (kp3 * qp[:, None, :]).reshape(bt * s, e)                        # (Bt*S, E)
    scores = jnp.dot(qk, p_ref[...], preferred_element_type=f32)          # (Bt*S, H)
    scores = scores.reshape(bt, s, h)                                     # (Bt, S, H)

    # ---- softmax over keys (axis=1), normalization deferred ----------------
    m = jnp.max(scores, axis=1, keepdims=True)                            # (Bt, 1, H)
    p_un = jnp.exp(scores - m)                                            # (Bt, S, H)
    denom = jnp.sum(p_un, axis=1)                                         # (Bt, H)
    # TODO(synk): attention dropout omitted (eval-mode identity; no RNG in fwd).

    # ---- context: MXU contraction over keys, head pick via P^T -------------
    hv = jnp.einsum("bsh,bse->bhe", p_un.astype(bf16), vp3.astype(bf16),
                    preferred_element_type=f32)                           # (Bt, H, E)
    ctx_un = jnp.sum(hv * pt_ref[...][None, :, :], axis=1)                # (Bt, E)

    # denom broadcast per-head across its E columns, then one EUP reciprocal.
    denom_full = jnp.dot(denom, pt_ref[...], preferred_element_type=f32)  # (Bt, E)
    ctx = ctx_un * pl.reciprocal(denom_full, approx=True)

    # ---- output projection --------------------------------------------------
    out = jnp.dot(ctx.astype(bf16), wo_ref[...], preferred_element_type=f32) + bo_ref[...]
    o_ref[...] = out.astype(o_ref.dtype)


def multi_head_attention(q, k, wq, bq, wk, bk, wv, bv, wo, bo, n_head, *, block_b=8):
    """Pallas forward of MultiHeadAttention.

    q : (B, E)     single query vector per batch element
    k : (B, S, E)  keys (values are projected from the same tensor)
    w*: (E, E)     PyTorch Linear weights, (out_features, in_features)
    b*: (E,)       PyTorch Linear biases
    returns (B, E)
    """
    b, e = q.shape
    _, s, _ = k.shape
    assert e % n_head == 0, "embed_dim must be divisible by n_head"
    hidden = e // n_head
    h = n_head

    # Batch-block the grid; pad B up to a multiple of Bt (padded rows are
    # computed but sliced off — each batch row's softmax is independent).
    bt = block_b
    b_pad = -(-b // bt) * bt
    if b_pad != b:
        q = jnp.pad(q, ((0, b_pad - b), (0, 0)))
        k = jnp.pad(k, ((0, b_pad - b), (0, 0), (0, 0)))

    # Pre-transpose weights so the kernel does x @ w (+ b) on the MXU; cast
    # the resident weights to bf16 (full-rate MXU, half VMEM footprint).
    wq_t, wk_t, wv_t, wo_t = (w.T.astype(jnp.bfloat16) for w in (wq, wk, wv, wo))
    bq2, bk2, bv2, bo2 = (v.reshape(1, e).astype(jnp.float32) for v in (bq, bk, bv, bo))

    # Head-selector matrix: P[c, head] = 1 iff column c belongs to that head.
    p = jnp.repeat(jnp.eye(h, dtype=jnp.float32), hidden, axis=0)   # (E, H)
    pt = p.T                                                        # (H, E)

    def const_spec(shape):
        return pl.BlockSpec(shape, lambda i: (0, 0))

    out = pl.pallas_call(
        functools.partial(_mha_kernel, bt=bt, s=s, e=e, h=h,
                          inv_sqrt_hidden=1.0 / math.sqrt(hidden)),
        out_shape=jax.ShapeDtypeStruct((b_pad, e), q.dtype),
        grid_spec=pltpu.PrefetchScalarGridSpec(
            num_scalar_prefetch=0,
            grid=(b_pad // bt,),
            in_specs=[
                pl.BlockSpec((bt, e), lambda i: (i, 0)),        # q block
                pl.BlockSpec((bt, s, e), lambda i: (i, 0, 0)),  # k block
                const_spec((e, e)), const_spec((1, e)),         # Wq^T, bq
                const_spec((e, e)), const_spec((1, e)),         # Wk^T, bk
                const_spec((e, e)), const_spec((1, e)),         # Wv^T, bv
                const_spec((e, e)), const_spec((1, e)),         # Wo^T, bo
                const_spec((e, h)),                             # P
                const_spec((h, e)),                             # P^T
            ],
            out_specs=pl.BlockSpec((bt, e), lambda i: (i, 0)),
        ),
        compiler_params=pltpu.CompilerParams(
            dimension_semantics=("parallel",),
            vmem_limit_bytes=32 * 1024 * 1024,
        ),
    )(q, k, wq_t, bq2, wk_t, bk2, wv_t, bv2, wo_t, bo2, p, pt)
    return out[:b]


def _mha_reference(q, k, wq, bq, wk, bk, wv, bv, wo, bo, n_head):
    """Pure-JAX reference mirroring the PyTorch forward (eval mode)."""
    hi = jax.lax.Precision.HIGHEST
    bsz, e = q.shape
    s = k.shape[1]
    hd = e // n_head
    qp = jnp.einsum("be,fe->bf", q, wq, precision=hi) + bq
    kp = jnp.einsum("bse,fe->bsf", k, wk, precision=hi) + bk
    vp = jnp.einsum("bse,fe->bsf", k, wv, precision=hi) + bv
    qh = qp.reshape(bsz, 1, n_head, hd).transpose(0, 2, 1, 3)   # (B,H,1,hd)
    kh = kp.reshape(bsz, s, n_head, hd).transpose(0, 2, 1, 3)   # (B,H,S,hd)
    vh = vp.reshape(bsz, s, n_head, hd).transpose(0, 2, 1, 3)   # (B,H,S,hd)
    scores = jnp.einsum("bhqd,bhkd->bhqk", qh, kh, precision=hi) / math.sqrt(hd)
    attn = jax.nn.softmax(scores, axis=-1)
    ctx = jnp.einsum("bhqk,bhkd->bhqd", attn, vh, precision=hi)  # (B,H,1,hd)
    ctx = ctx.transpose(0, 2, 1, 3).reshape(bsz, e)
    return jnp.einsum("be,fe->bf", ctx, wo, precision=hi) + bo


if __name__ == "__main__":
    key = jax.random.PRNGKey(0)
    batch, seq, embed_dim, n_head = 2, 8, 32, 4

    keys = jax.random.split(key, 10)
    q = jax.random.normal(keys[0], (batch, embed_dim), dtype=jnp.float32)
    k = jax.random.normal(keys[1], (batch, seq, embed_dim), dtype=jnp.float32)

    bound = 1.0 / math.sqrt(embed_dim)

    def linear_params(kw, kb):
        w = jax.random.uniform(kw, (embed_dim, embed_dim), jnp.float32, -bound, bound)
        bvec = jax.random.uniform(kb, (embed_dim,), jnp.float32, -bound, bound)
        return w, bvec

    wq, bq = linear_params(keys[2], keys[3])
    wk, bk = linear_params(keys[4], keys[5])
    wv, bv = linear_params(keys[6], keys[7])
    wo, bo = linear_params(keys[8], keys[9])

    y = multi_head_attention(q, k, wq, bq, wk, bk, wv, bv, wo, bo, n_head)
    y = jax.block_until_ready(y)

    ref = _mha_reference(q, k, wq, bq, wk, bk, wv, bv, wo, bo, n_head)
    assert y.shape == ref.shape == (batch, embed_dim)
    assert y.dtype == q.dtype
    # bf16 MXU inputs + approximate reciprocal vs. an f32 HIGHEST-precision
    # reference: accept ~1e-2-level error explicitly (per the review notes).
    err = float(jnp.max(jnp.abs(y - ref)))
    assert jnp.allclose(y, ref, atol=5e-2, rtol=5e-2), f"max abs err = {err}"

    print("KERNEL_OK")
</pallas_src>

<mosaic_0001>
module attributes {stable_mosaic.version = 11 : i64} {
  func.func @_mha_kernel(%arg0: i32, %arg1: memref<8x32xf32, #tpu.memory_space<vmem>>, %arg2: memref<8x8x32xf32, #tpu.memory_space<vmem>>, %arg3: memref<32x32xbf16, #tpu.memory_space<vmem>>, %arg4: memref<1x32xf32, #tpu.memory_space<vmem>>, %arg5: memref<32x32xbf16, #tpu.memory_space<vmem>>, %arg6: memref<1x32xf32, #tpu.memory_space<vmem>>, %arg7: memref<32x32xbf16, #tpu.memory_space<vmem>>, %arg8: memref<1x32xf32, #tpu.memory_space<vmem>>, %arg9: memref<32x32xbf16, #tpu.memory_space<vmem>>, %arg10: memref<1x32xf32, #tpu.memory_space<vmem>>, %arg11: memref<32x4xf32, #tpu.memory_space<vmem>>, %arg12: memref<4x32xf32, #tpu.memory_space<vmem>>, %arg13: memref<8x32xf32, #tpu.memory_space<vmem>>) attributes {dimension_semantics = [#tpu.dimension_semantics<parallel>], iteration_bounds = array<i64: 1>, scalar_prefetch = 0 : i64, scratch_operands = 0 : i64, tpu.core_type = #tpu.core_type<tc>, window_params = [{transform_indices = @transform_0, window_bounds = array<i64: 8, 32>}, {transform_indices = @transform_1, window_bounds = array<i64: 8, 8, 32>}, {pipeline_mode = #tpu.pipeline_mode<synchronous>, transform_indices = @transform_2, window_bounds = array<i64: 32, 32>}, {pipeline_mode = #tpu.pipeline_mode<synchronous>, transform_indices = @transform_3, window_bounds = array<i64: 1, 32>}, {pipeline_mode = #tpu.pipeline_mode<synchronous>, transform_indices = @transform_4, window_bounds = array<i64: 32, 32>}, {pipeline_mode = #tpu.pipeline_mode<synchronous>, transform_indices = @transform_5, window_bounds = array<i64: 1, 32>}, {pipeline_mode = #tpu.pipeline_mode<synchronous>, transform_indices = @transform_6, window_bounds = array<i64: 32, 32>}, {pipeline_mode = #tpu.pipeline_mode<synchronous>, transform_indices = @transform_7, window_bounds = array<i64: 1, 32>}, {pipeline_mode = #tpu.pipeline_mode<synchronous>, transform_indices = @transform_8, window_bounds = array<i64: 32, 32>}, {pipeline_mode = #tpu.pipeline_mode<synchronous>, transform_indices = @transform_9, window_bounds = array<i64: 1, 32>}, {pipeline_mode = #tpu.pipeline_mode<synchronous>, transform_indices = @transform_10, window_bounds = array<i64: 32, 4>}, {pipeline_mode = #tpu.pipeline_mode<synchronous>, transform_indices = @transform_11, window_bounds = array<i64: 4, 32>}, {transform_indices = @transform_12, window_bounds = array<i64: 8, 32>}]} {
    %c0 = arith.constant 0 : index
    %c0_0 = arith.constant 0 : index
    %0 = vector.load %arg1[%c0, %c0_0] : memref<8x32xf32, #tpu.memory_space<vmem>>, vector<8x32xf32>
    %1 = arith.truncf %0 : vector<8x32xf32> to vector<8x32xbf16>
    %c0_1 = arith.constant 0 : index
    %c0_2 = arith.constant 0 : index
    %2 = vector.load %arg3[%c0_1, %c0_2] : memref<32x32xbf16, #tpu.memory_space<vmem>>, vector<32x32xbf16>
    %cst = arith.constant dense<0.000000e+00> : vector<8x32xf32>
    %3 = tpu.matmul %1, %2, %cst {dimension_numbers = #tpu.dot_dimension_numbers<[1], [0], [0], [1], [0, 0, 1, 1], [], []>} : vector<8x32xbf16>, vector<32x32xbf16>, vector<8x32xf32> -> vector<8x32xf32>
    %c0_3 = arith.constant 0 : index
    %c0_4 = arith.constant 0 : index
    %4 = vector.load %arg4[%c0_3, %c0_4] : memref<1x32xf32, #tpu.memory_space<vmem>>, vector<1x32xf32>
    %5 = vector.broadcast %4 : vector<1x32xf32> to vector<8x32xf32>
    %6 = arith.addf %3, %5 : vector<8x32xf32>
    %cst_5 = arith.constant 0.353553385 : f32
    %7 = vector.broadcast %cst_5 : f32 to vector<8x32xf32>
    %8 = arith.mulf %6, %7 : vector<8x32xf32>
    %c0_6 = arith.constant 0 : index
    %c0_7 = arith.constant 0 : index
    %c0_8 = arith.constant 0 : index
    %9 = vector.load %arg2[%c0_6, %c0_7, %c0_8] : memref<8x8x32xf32, #tpu.memory_space<vmem>>, vector<8x8x32xf32>
    %10 = vector.shape_cast %9 : vector<8x8x32xf32> to vector<64x32xf32>
    %11 = arith.truncf %10 : vector<64x32xf32> to vector<64x32xbf16>
    %c0_9 = arith.constant 0 : index
    %c0_10 = arith.constant 0 : index
    %12 = vector.load %arg5[%c0_9, %c0_10] : memref<32x32xbf16, #tpu.memory_space<vmem>>, vector<32x32xbf16>
    %cst_11 = arith.constant dense<0.000000e+00> : vector<64x32xf32>
    %13 = tpu.matmul %11, %12, %cst_11 {dimension_numbers = #tpu.dot_dimension_numbers<[1], [0], [0], [1], [0, 0, 1, 1], [], []>} : vector<64x32xbf16>, vector<32x32xbf16>, vector<64x32xf32> -> vector<64x32xf32>
    %c0_12 = arith.constant 0 : index
    %c0_13 = arith.constant 0 : index
    %14 = vector.load %arg6[%c0_12, %c0_13] : memref<1x32xf32, #tpu.memory_space<vmem>>, vector<1x32xf32>
    %15 = vector.broadcast %14 : vector<1x32xf32> to vector<64x32xf32>
    %16 = arith.addf %13, %15 : vector<64x32xf32>
    %c0_14 = arith.constant 0 : index
    %c0_15 = arith.constant 0 : index
    %17 = vector.load %arg7[%c0_14, %c0_15] : memref<32x32xbf16, #tpu.memory_space<vmem>>, vector<32x32xbf16>
    %cst_16 = arith.constant dense<0.000000e+00> : vector<64x32xf32>
    %18 = tpu.matmul %11, %17, %cst_16 {dimension_numbers = #tpu.dot_dimension_numbers<[1], [0], [0], [1], [0, 0, 1, 1], [], []>} : vector<64x32xbf16>, vector<32x32xbf16>, vector<64x32xf32> -> vector<64x32xf32>
    %c0_17 = arith.constant 0 : index
    %c0_18 = arith.constant 0 : index
    %19 = vector.load %arg8[%c0_17, %c0_18] : memref<1x32xf32, #tpu.memory_space<vmem>>, vector<1x32xf32>
    %20 = vector.broadcast %19 : vector<1x32xf32> to vector<64x32xf32>
    %21 = arith.addf %18, %20 : vector<64x32xf32>
    %22 = vector.shape_cast %16 : vector<64x32xf32> to vector<8x8x32xf32>
    %23 = vector.shape_cast %21 : vector<64x32xf32> to vector<8x8x32xf32>
    %24 = vector.shape_cast %8 : vector<8x32xf32> to vector<8x1x32xf32>
    %25 = vector.broadcast %24 : vector<8x1x32xf32> to vector<8x8x32xf32>
    %26 = arith.mulf %22, %25 : vector<8x8x32xf32>
    %27 = vector.shape_cast %26 : vector<8x8x32xf32> to vector<64x32xf32>
    %c0_19 = arith.constant 0 : index
    %c0_20 = arith.constant 0 : index
    %28 = vector.load %arg11[%c0_19, %c0_20] : memref<32x4xf32, #tpu.memory_space<vmem>>, vector<32x4xf32>
    %cst_21 = arith.constant dense<0.000000e+00> : vector<64x4xf32>
    %29 = tpu.matmul %27, %28, %cst_21 {dimension_numbers = #tpu.dot_dimension_numbers<[1], [0], [0], [1], [0, 0, 1, 1], [], []>} : vector<64x32xf32>, vector<32x4xf32>, vector<64x4xf32> -> vector<64x4xf32>
    %30 = vector.shape_cast %29 : vector<64x4xf32> to vector<8x8x4xf32>
    %cst_22 = arith.constant dense<0xFF800000> : vector<8x4xf32>
    %31 = vector.multi_reduction <maximumf>, %30, %cst_22 [1] : vector<8x8x4xf32> to vector<8x4xf32>
    %32 = vector.shape_cast %31 : vector<8x4xf32> to vector<8x1x4xf32>
    %33 = vector.broadcast %32 : vector<8x1x4xf32> to vector<8x8x4xf32>
    %34 = arith.subf %30, %33 : vector<8x8x4xf32>
    %35 = math.exp %34 : vector<8x8x4xf32>
    %cst_23 = arith.constant dense<0.000000e+00> : vector<8x4xf32>
    %36 = vector.multi_reduction <add>, %35, %cst_23 [1] : vector<8x8x4xf32> to vector<8x4xf32>
    %37 = arith.truncf %35 : vector<8x8x4xf32> to vector<8x8x4xbf16>
    %38 = arith.truncf %23 : vector<8x8x32xf32> to vector<8x8x32xbf16>
    "tpu.trace_start"() <{level = 10 : i32, message = "bsh,bse->bhe"}> : () -> ()
    %cst_24 = arith.constant dense<0.000000e+00> : vector<8x4x32xf32>
    %39 = tpu.matmul %37, %38, %cst_24 {dimension_numbers = #tpu.dot_dimension_numbers<[1], [1], [2], [2], [0, 0, 0, 2, 1, 2], [0], [0]>} : vector<8x8x4xbf16>, vector<8x8x32xbf16>, vector<8x4x32xf32> -> vector<8x4x32xf32>
    "tpu.trace_stop"() : () -> ()
    %c0_25 = arith.constant 0 : index
    %c0_26 = arith.constant 0 : index
    %40 = vector.load %arg12[%c0_25, %c0_26] : memref<4x32xf32, #tpu.memory_space<vmem>>, vector<4x32xf32>
    %41 = vector.shape_cast %40 : vector<4x32xf32> to vector<1x4x32xf32>
    %42 = vector.broadcast %41 : vector<1x4x32xf32> to vector<8x4x32xf32>
    %43 = arith.mulf %39, %42 : vector<8x4x32xf32>
    %cst_27 = arith.constant dense<0.000000e+00> : vector<8x32xf32>
    %44 = vector.multi_reduction <add>, %43, %cst_27 [1] : vector<8x4x32xf32> to vector<8x32xf32>
    %c0_28 = arith.constant 0 : index
    %c0_29 = arith.constant 0 : index
    %45 = vector.load %arg12[%c0_28, %c0_29] : memref<4x32xf32, #tpu.memory_space<vmem>>, vector<4x32xf32>
    %cst_30 = arith.constant dense<0.000000e+00> : vector<8x32xf32>
    %46 = tpu.matmul %36, %45, %cst_30 {dimension_numbers = #tpu.dot_dimension_numbers<[1], [0], [0], [1], [0, 0, 1, 1], [], []>} : vector<8x4xf32>, vector<4x32xf32>, vector<8x32xf32> -> vector<8x32xf32>
    %47 = tpu.reciprocal %46 {approx = true} : vector<8x32xf32> -> vector<8x32xf32>
    %48 = arith.mulf %44, %47 : vector<8x32xf32>
    %49 = arith.truncf %48 : vector<8x32xf32> to vector<8x32xbf16>
    %c0_31 = arith.constant 0 : index
    %c0_32 = arith.constant 0 : index
    %50 = vector.load %arg9[%c0_31, %c0_32] : memref<32x32xbf16, #tpu.memory_space<vmem>>, vector<32x32xbf16>
    %cst_33 = arith.constant dense<0.000000e+00> : vector<8x32xf32>
    %51 = tpu.matmul %49, %50, %cst_33 {dimension_numbers = #tpu.dot_dimension_numbers<[1], [0], [0], [1], [0, 0, 1, 1], [], []>} : vector<8x32xbf16>, vector<32x32xbf16>, vector<8x32xf32> -> vector<8x32xf32>
    %c0_34 = arith.constant 0 : index
    %c0_35 = arith.constant 0 : index
    %52 = vector.load %arg10[%c0_34, %c0_35] : memref<1x32xf32, #tpu.memory_space<vmem>>, vector<1x32xf32>
    %53 = vector.broadcast %52 : vector<1x32xf32> to vector<8x32xf32>
    %54 = arith.addf %51, %53 : vector<8x32xf32>
    %c0_36 = arith.constant 0 : index
    %c0_37 = arith.constant 0 : index
    %55 = vector.load %arg13[%c0_36, %c0_37] : memref<8x32xf32, #tpu.memory_space<vmem>>, vector<8x32xf32>
    tpu.vector_store %arg13[%c0_36, %c0_37], %54 {strides = array<i32>} : memref<8x32xf32, #tpu.memory_space<vmem>>, vector<8x32xf32>,
    return
  }
  func.func @transform_0(%arg0: i32) -> (i32, i32) {
    %c0_i32 = arith.constant 0 : i32
    %c0_i32_0 = arith.constant 0 : i32
    return %arg0, %c0_i32 : i32, i32
  }
  func.func @transform_1(%arg0: i32) -> (i32, i32, i32) {
    %c0_i32 = arith.constant 0 : i32
    %c0_i32_0 = arith.constant 0 : i32
    %c0_i32_1 = arith.constant 0 : i32
    return %arg0, %c0_i32, %c0_i32_0 : i32, i32, i32
  }
  func.func @transform_2(%arg0: i32) -> (i32, i32) {
    %c0_i32 = arith.constant 0 : i32
    %c0_i32_0 = arith.constant 0 : i32
    %c0_i32_1 = arith.constant 0 : i32
    return %c0_i32, %c0_i32_0 : i32, i32
  }
  func.func @transform_3(%arg0: i32) -> (i32, i32) {
    %c0_i32 = arith.constant 0 : i32
    %c0_i32_0 = arith.constant 0 : i32
    %c0_i32_1 = arith.constant 0 : i32
    return %c0_i32, %c0_i32_0 : i32, i32
  }
  func.func @transform_4(%arg0: i32) -> (i32, i32) {
    %c0_i32 = arith.constant 0 : i32
    %c0_i32_0 = arith.constant 0 : i32
    %c0_i32_1 = arith.constant 0 : i32
    return %c0_i32, %c0_i32_0 : i32, i32
  }
  func.func @transform_5(%arg0: i32) -> (i32, i32) {
    %c0_i32 = arith.constant 0 : i32
    %c0_i32_0 = arith.constant 0 : i32
    %c0_i32_1 = arith.constant 0 : i32
    return %c0_i32, %c0_i32_0 : i32, i32
  }
  func.func @transform_6(%arg0: i32) -> (i32, i32) {
    %c0_i32 = arith.constant 0 : i32
    %c0_i32_0 = arith.constant 0 : i32
    %c0_i32_1 = arith.constant 0 : i32
    return %c0_i32, %c0_i32_0 : i32, i32
  }
  func.func @transform_7(%arg0: i32) -> (i32, i32) {
    %c0_i32 = arith.constant 0 : i32
    %c0_i32_0 = arith.constant 0 : i32
    %c0_i32_1 = arith.constant 0 : i32
    return %c0_i32, %c0_i32_0 : i32, i32
  }
  func.func @transform_8(%arg0: i32) -> (i32, i32) {
    %c0_i32 = arith.constant 0 : i32
    %c0_i32_0 = arith.constant 0 : i32
    %c0_i32_1 = arith.constant 0 : i32
    return %c0_i32, %c0_i32_0 : i32, i32
  }
  func.func @transform_9(%arg0: i32) -> (i32, i32) {
    %c0_i32 = arith.constant 0 : i32
    %c0_i32_0 = arith.constant 0 : i32
    %c0_i32_1 = arith.constant 0 : i32
    return %c0_i32, %c0_i32_0 : i32, i32
  }
  func.func @transform_10(%arg0: i32) -> (i32, i32) {
    %c0_i32 = arith.constant 0 : i32
    %c0_i32_0 = arith.constant 0 : i32
    %c0_i32_1 = arith.constant 0 : i32
    return %c0_i32, %c0_i32_0 : i32, i32
  }
  func.func @transform_11(%arg0: i32) -> (i32, i32) {
    %c0_i32 = arith.constant 0 : i32
    %c0_i32_0 = arith.constant 0 : i32
    %c0_i32_1 = arith.constant 0 : i32
    return %c0_i32, %c0_i32_0 : i32, i32
  }
  func.func @transform_12(%arg0: i32) -> (i32, i32) {
    %c0_i32 = arith.constant 0 : i32
    %c0_i32_0 = arith.constant 0 : i32
    return %arg0, %c0_i32 : i32, i32
  }
}

</mosaic_0001>

<llo_original>
// kernel: tpu_custom_call.1
$region0: #{tpu_custom_call.1}
  #allocation0 [shape = 'u32[]', space=smem, size = 0x4, offset = 0x4, fixed_abs, tag = 'smem constant byte address 0x4 - core index']
  #allocation1 [shape = 'u32[144,128]{1,0:T(1,128)}', space=vmem, size = 0x12000, scoped, tag = 'internal scratch']
  %s0 = inlined_call_operand.hbm [shape: f32[8,32], index: 0, kind: input, shape index: {}]
  %s1 = inlined_call_operand.hbm [shape: f32[8,8,32], index: 1, kind: input, shape index: {}]
  %s2 = inlined_call_operand.vmem [shape: bf16[32,32], index: 2, kind: input, shape index: {}]
  %s3 = inlined_call_operand.vmem [shape: f32[1,32], index: 3, kind: input, shape index: {}]
  %s4 = inlined_call_operand.vmem [shape: bf16[32,32], index: 4, kind: input, shape index: {}]
  %s5 = inlined_call_operand.hbm [shape: f32[1,32], index: 5, kind: input, shape index: {}]
  %s6 = inlined_call_operand.vmem [shape: bf16[32,32], index: 6, kind: input, shape index: {}]
  %s7 = inlined_call_operand.hbm [shape: f32[1,32], index: 7, kind: input, shape index: {}]
  %s8 = inlined_call_operand.vmem [shape: bf16[32,32], index: 8, kind: input, shape index: {}]
  %s9 = inlined_call_operand.hbm [shape: f32[1,32], index: 9, kind: input, shape index: {}]
  %s10 = inlined_call_operand.vmem [shape: f32[32,4], index: 10, kind: input, shape index: {}]
  %s11 = inlined_call_operand.vmem [shape: f32[4,32], index: 11, kind: input, shape index: {}]
  %s12 = inlined_call_operand.hbm [shape: f32[8,32], index: 12, kind: output, shape index: {}]
  %s13 = sld [smem:[#allocation0]]
  $region78: #{tpu_custom_call.1} parent=0
    _
  %s15 = ssub.s32 1, %s13
  %s16 = scalar_select 0, %s15, %s13
  $region1: #{tpu_custom_call.1} parent=0
    #allocation2 [shape = 'u8[4096]{0}', space=vmem, size = 0x1000, scoped, tag = 'input window, operand 0, single buffered']
    #allocation3 [shape = 's32[1]{0}', space=sflag, size = 0x4, scoped, tag = 'scoped memory for tpu_custom_call.1']
    #allocation4 [shape = 's32[1]{0}', space=sflag, size = 0x4, scoped, tag = 'scoped memory for tpu_custom_call.1']
    #allocation5 [shape = 'u8[32768]{0}', space=vmem, size = 0x8000, scoped, tag = 'input window, operand 1, single buffered']
    #allocation6 [shape = 's32[1]{0}', space=sflag, size = 0x4, scoped, tag = 'scoped memory for tpu_custom_call.1']
    #allocation7 [shape = 'u8[512]{0}', space=vmem, size = 0x400, scoped, tag = 'input window, operand 5, single buffered']
    #allocation8 [shape = 'u8[512]{0}', space=vmem, size = 0x400, scoped, tag = 'input window, operand 7, single buffered']
    #allocation9 [shape = 's32[1]{0}', space=sflag, size = 0x4, scoped, tag = 'scoped memory for tpu_custom_call.1']
    #allocation10 [shape = 'u8[512]{0}', space=vmem, size = 0x400, scoped, tag = 'input window, operand 9, single buffered']
    #allocation11 [shape = 'u8[4096]{0}', space=vmem, size = 0x1000, scoped, tag = 'output window, operand 0, single buffered']
    %17 = vsyncpa [#allocation3], 0
    %18 = vsyncpa [#allocation6], 0
    %19 = vsyncpa [#allocation9], 0
    %20 = vsyncpa [#allocation4], 0
    // Predicated region
    $region2: #{tpu_custom_call.1} parent=1 // pred_check
      _
    $region3: #{tpu_custom_call.1} parent=1 // pred_check_branch
      %22 = sbr.rel (0) target = $region5
    $region4: #{tpu_custom_call.1} parent=1 // pred_region
      %s24 = ssub.s32 128, 128
      %25 = vsyncadd [#allocation3], %s24
      %s27 = sshll.u32 [#allocation2], 4
      %s28 = int_to_ptr.vmem [resolvable:$true] %s27
      %30 = dma.hbm_to_vmem [thread:$0]  %s0, 128, %s28, [#allocation3]
    $region5: #{tpu_custom_call.1} parent=1 // pred_fallthru
      _
    // Predicated region
    $region6: #{tpu_custom_call.1} parent=1 // pred_check
      _
    $region7: #{tpu_custom_call.1} parent=1 // pred_check_branch
      %32 = sbr.rel (0) target = $region9
    $region8: #{tpu_custom_call.1} parent=1 // pred_region
      %s34 = ssub.s32 1024, 1024
      %35 = vsyncadd [#allocation6], %s34
      %s36 = sshll.u32 [#allocation5], 4
      %s37 = int_to_ptr.vmem [resolvable:$true] %s36
      %42 = dma.hbm_to_vmem [thread:$0]  %s1, 1024, %s37, [#allocation6], 128, 128, 8
    $region9: #{tpu_custom_call.1} parent=1 // pred_fallthru
      _
    // Predicated region
    $region10: #{tpu_custom_call.1} parent=1 // pred_check
      _
    $region11: #{tpu_custom_call.1} parent=1 // pred_check_branch
      %44 = sbr.rel (0) target = $region13
    $region12: #{tpu_custom_call.1} parent=1 // pred_region
      _
    $region13: #{tpu_custom_call.1} parent=1 // pred_fallthru
      _
    // Predicated region
    $region14: #{tpu_custom_call.1} parent=1 // pred_check
      _
    $region15: #{tpu_custom_call.1} parent=1 // pred_check_branch
      %46 = sbr.rel (0) target = $region17
    $region16: #{tpu_custom_call.1} parent=1 // pred_region
      _
    $region17: #{tpu_custom_call.1} parent=1 // pred_fallthru
      _
    // Predicated region
    $region18: #{tpu_custom_call.1} parent=1 // pred_check
      _
    $region19: #{tpu_custom_call.1} parent=1 // pred_check_branch
      %48 = sbr.rel (0) target = $region21
    $region20: #{tpu_custom_call.1} parent=1 // pred_region
      _
    $region21: #{tpu_custom_call.1} parent=1 // pred_fallthru
      _
    // Predicated region
    $region22: #{tpu_custom_call.1} parent=1 // pred_check
      _
    $region23: #{tpu_custom_call.1} parent=1 // pred_check_branch
      %50 = sbr.rel (0) target = $region25
    $region24: #{tpu_custom_call.1} parent=1 // pred_region
      %s52 = ssub.s32 16, 16
      %53 = vsyncadd [#allocation6], %s52
      %s55 = sshll.u32 [#allocation7], 4
      %s56 = int_to_ptr.vmem [resolvable:$true] %s55
      %58 = dma.hbm_to_vmem [thread:$0]  %s5, 16, %s56, [#allocation6]
    $region25: #{tpu_custom_call.1} parent=1 // pred_fallthru
      _
    // Predicated region
    $region26: #{tpu_custom_call.1} parent=1 // pred_check
      _
    $region27: #{tpu_custom_call.1} parent=1 // pred_check_branch
      %60 = sbr.rel (0) target = $region29
    $region28: #{tpu_custom_call.1} parent=1 // pred_region
      _
    $region29: #{tpu_custom_call.1} parent=1 // pred_fallthru
      _
    // Predicated region
    $region30: #{tpu_custom_call.1} parent=1 // pred_check
      _
    $region31: #{tpu_custom_call.1} parent=1 // pred_check_branch
      %62 = sbr.rel (0) target = $region33
    $region32: #{tpu_custom_call.1} parent=1 // pred_region
      %s64 = ssub.s32 16, 16
      %65 = vsyncadd [#allocation9], %s64
      %s67 = sshll.u32 [#allocation8], 4
      %s68 = int_to_ptr.vmem [resolvable:$true] %s67
      %70 = dma.hbm_to_vmem [thread:$0]  %s7, 16, %s68, [#allocation9]
    $region33: #{tpu_custom_call.1} parent=1 // pred_fallthru
      _
    // Predicated region
    $region34: #{tpu_custom_call.1} parent=1 // pred_check
      _
    $region35: #{tpu_custom_call.1} parent=1 // pred_check_branch
      %72 = sbr.rel (0) target = $region37
    $region36: #{tpu_custom_call.1} parent=1 // pred_region
      _
    $region37: #{tpu_custom_call.1} parent=1 // pred_fallthru
      _
    // Predicated region
    $region38: #{tpu_custom_call.1} parent=1 // pred_check
      _
    $region39: #{tpu_custom_call.1} parent=1 // pred_check_branch
      %74 = sbr.rel (0) target = $region41
    $region40: #{tpu_custom_call.1} parent=1 // pred_region
      %s76 = ssub.s32 16, 16
      %77 = vsyncadd [#allocation9], %s76
      %s79 = sshll.u32 [#allocation10], 4
      %s80 = int_to_ptr.vmem [resolvable:$true] %s79
      %82 = dma.hbm_to_vmem [thread:$0]  %s9, 16, %s80, [#allocation9]
    $region41: #{tpu_custom_call.1} parent=1 // pred_fallthru
      _
    // Predicated region
    $region42: #{tpu_custom_call.1} parent=1 // pred_check
      _
    $region43: #{tpu_custom_call.1} parent=1 // pred_check_branch
      %84 = sbr.rel (0) target = $region45
    $region44: #{tpu_custom_call.1} parent=1 // pred_region
      _
    $region45: #{tpu_custom_call.1} parent=1 // pred_fallthru
      _
    // Predicated region
    $region46: #{tpu_custom_call.1} parent=1 // pred_check
      _
    $region47: #{tpu_custom_call.1} parent=1 // pred_check_branch
      %86 = sbr.rel (0) target = $region49
    $region48: #{tpu_custom_call.1} parent=1 // pred_region
      _
    $region49: #{tpu_custom_call.1} parent=1 // pred_fallthru
      _
    // Predicated region
    $region50: #{tpu_custom_call.1} parent=1 // pred_check
      _
    $region51: #{tpu_custom_call.1} parent=1 // pred_check_branch
      %88 = sbr.rel (0) target = $region53
    $region52: #{tpu_custom_call.1} parent=1 // pred_region
      %89 = dma.done [#allocation3], 128
    $region53: #{tpu_custom_call.1} parent=1 // pred_fallthru
      _
    // Predicated region
    $region54: #{tpu_custom_call.1} parent=1 // pred_check
      _
    $region55: #{tpu_custom_call.1} parent=1 // pred_check_branch
      %91 = sbr.rel (0) target = $region57
    $region56: #{tpu_custom_call.1} parent=1 // pred_region
      %92 = dma.done [#allocation6], 1024
    $region57: #{tpu_custom_call.1} parent=1 // pred_fallthru
      _
    // Predicated region
    $region58: #{tpu_custom_call.1} parent=1 // pred_check
      _
    $region59: #{tpu_custom_call.1} parent=1 // pred_check_branch
      %94 = sbr.rel (0) target = $region61
    $region60: #{tpu_custom_call.1} parent=1 // pred_region
      %95 = dma.done [#allocation6], 16
    $region61: #{tpu_custom_call.1} parent=1 // pred_fallthru
      _
    // Predicated region
    $region62: #{tpu_custom_call.1} parent=1 // pred_check
      _
    $region63: #{tpu_custom_call.1} parent=1 // pred_check_branch
      %97 = sbr.rel (0) target = $region65
    $region64: #{tpu_custom_call.1} parent=1 // pred_region
      %98 = dma.done [#allocation9], 16
    $region65: #{tpu_custom_call.1} parent=1 // pred_fallthru
      _
    // Predicated region
    $region66: #{tpu_custom_call.1} parent=1 // pred_check
      _
    $region67: #{tpu_custom_call.1} parent=1 // pred_check_branch
      %100 = sbr.rel (0) target = $region69
    $region68: #{tpu_custom_call.1} parent=1 // pred_region
      %101 = dma.done [#allocation9], 16
    $region69: #{tpu_custom_call.1} parent=1 // pred_fallthru
      _
    %v103 = vld [vmem:[#allocation2] sm:$0xff]
    %v104 = vpack.c.bf16 %v103, %v103
    %v105 = vld [vmem:[%s2] sm:$0xf]
    %v106 = vld [vmem:[%s2 + $0x4] sm:$0xf]
    %v107 = vld [vmem:[%s2 + $0x8] sm:$0xf]
    %v108 = vld [vmem:[%s2 + $0xc] sm:$0xf]
    %v109 = vld [vmem:[%s3] sm:$0x1]
    %v111 = vlaneseq
    %v112 = vshrl.u32 %v111, 7
    %v113 = vsub.s32 0, %v112
    %v114 = vrot.slane %v109, %v113
    %v120 = vunpack.c.l.b16 %v105
    %v121 = vunpack.c.l.b16 %v106
    %v122 = vunpack.c.l.b16 %v107
    %v123 = vunpack.c.l.b16 %v108
    %v124 = vpack.c.b16 %v121, %v120
    %v125 = vpack.c.b16 %v123, %v122
    %vm128 = vcmask 261120
    %v130 = vsel %vm128, %v104, 0
    %132 = vmatprep.subr.bf16.mxu0 0
    %133 = vmatpush1.bf16.msra.mxu0 %v124
    %134 = vmatprep.subr.bf16.mxu0 0
    %135 = vmatpush1.bf16.msra.mxu0 %v125
    %136 = vmatprep.subr.bf16.mxu0 0
    %137 = vmatpush1.bf16.msra.mxu0 0
    %138 = vmatprep.subr.bf16.mxu0 0
    %139 = vmatpush1.bf16.msra.mxu0 0
    %140 = vmatprep.subr.bf16.mxu0 0
    %141 = vmatpush1.bf16.msra.mxu0 0
    %142 = vmatprep.subr.bf16.mxu0 0
    %143 = vmatpush1.bf16.msra.mxu0 0
    %144 = vmatprep.subr.bf16.mxu0 0
    %145 = vmatpush1.bf16.msra.mxu0 0
    %146 = vmatprep.subr.bf16.mxu0 0
    %147 = vmatpush1.bf16.msra.mxu0 0
    %148 = vmatprep.subr.bf16.mxu0 0
    %149 = vmatpush1.bf16.msra.mxu0 0
    %150 = vmatprep.subr.bf16.mxu0 0
    %151 = vmatpush1.bf16.msra.mxu0 0
    %152 = vmatprep.subr.bf16.mxu0 0
    %153 = vmatpush1.bf16.msra.mxu0 0
    %154 = vmatprep.subr.bf16.mxu0 0
    %155 = vmatpush1.bf16.msra.mxu0 0
    %156 = vmatprep.subr.bf16.mxu0 0
    %157 = vmatpush1.bf16.msra.mxu0 0
    %158 = vmatprep.subr.bf16.mxu0 0
    %159 = vmatpush1.bf16.msra.mxu0 0
    %160 = vmatprep.subr.bf16.mxu0 0
    %161 = vmatpush1.bf16.msra.mxu0 0
    %162 = vmatprep.subr.bf16.mxu0 0
    %163 = vmatpush1.bf16.msra.mxu0 0
    %164 = vmatprep.mubr.bf16.mxu0 0
    %165 = vmatmul.mubr.bf16.gmra.mrb[0].mxu0 %v130
    %v166 = vpop.f32.mrb[0].mxu0
    %v167 = vadd.f32 %v114, %v166
    %v168 = vpop.f32.mrb[0].mxu0
    %v169 = vpop.f32.mrb[0].mxu0
    %v170 = vpop.f32.mrb[0].mxu0
    %171 = vdwg.mxu0
    %v172 = vmul.f32 %v167, 0.35355338
    %v173 = vld [vmem:[#allocation5] sm:$0xff]
    %v174 = vld [vmem:[#allocation5 + $0x8] sm:$0xff]
    %v175 = vld [vmem:[#allocation5 + $0x10] sm:$0xff]
    %v176 = vld [vmem:[#allocation5 + $0x18] sm:$0xff]
    %v177 = vld [vmem:[#allocation5 + $0x20] sm:$0xff]
    %v178 = vld [vmem:[#allocation5 + $0x28] sm:$0xff]
    %v179 = vld [vmem:[#allocation5 + $0x30] sm:$0xff]
    %v180 = vld [vmem:[#allocation5 + $0x38] sm:$0xff]
    %v181 = vpack.c.bf16 %v174, %v173
    %v182 = vpack.c.bf16 %v176, %v175
    %v183 = vpack.c.bf16 %v178, %v177
    %v184 = vpack.c.bf16 %v180, %v179
    %v185 = vld [vmem:[%s4] sm:$0xf]
    %v186 = vld [vmem:[%s4 + $0x4] sm:$0xf]
    %v187 = vld [vmem:[%s4 + $0x8] sm:$0xf]
    %v188 = vld [vmem:[%s4 + $0xc] sm:$0xf]
    %v189 = vld [vmem:[#allocation7] sm:$0x1]
    %v191 = vlaneseq
    %v192 = vshrl.u32 %v191, 7
    %v193 = vsub.s32 0, %v192
    %v194 = vrot.slane %v189, %v193
    %v200 = vunpack.c.l.b16 %v185
    %v201 = vunpack.c.l.b16 %v186
    %v202 = vunpack.c.l.b16 %v187
    %v203 = vunpack.c.l.b16 %v188
    %v204 = vpack.c.b16 %v201, %v200
    %v205 = vpack.c.b16 %v203, %v202
    %v209 = vsel %vm128, %v181, 0
    %v212 = vsel %vm128, %v182, 0
    %v215 = vsel %vm128, %v183, 0
    %v218 = vsel %vm128, %v184, 0
    %220 = vmatprep.subr.bf16.mxu0 0
    %221 = vmatpush1.bf16.msra.mxu0 %v204
    %222 = vmatprep.subr.bf16.mxu0 0
    %223 = vmatpush1.bf16.msra.mxu0 %v205
    %224 = vmatprep.subr.bf16.mxu0 0
    %225 = vmatpush1.bf16.msra.mxu0 0
    %226 = vmatprep.subr.bf16.mxu0 0
    %227 = vmatpush1.bf16.msra.mxu0 0
    %228 = vmatprep.subr.bf16.mxu0 0
    %229 = vmatpush1.bf16.msra.mxu0 0
    %230 = vmatprep.subr.bf16.mxu0 0
    %231 = vmatpush1.bf16.msra.mxu0 0
    %232 = vmatprep.subr.bf16.mxu0 0
    %233 = vmatpush1.bf16.msra.mxu0 0
    %234 = vmatprep.subr.bf16.mxu0 0
    %235 = vmatpush1.bf16.msra.mxu0 0
    %236 = vmatprep.subr.bf16.mxu0 0
    %237 = vmatpush1.bf16.msra.mxu0 0
    %238 = vmatprep.subr.bf16.mxu0 0
    %239 = vmatpush1.bf16.msra.mxu0 0
    %240 = vmatprep.subr.bf16.mxu0 0
    %241 = vmatpush1.bf16.msra.mxu0 0
    %242 = vmatprep.subr.bf16.mxu0 0
    %243 = vmatpush1.bf16.msra.mxu0 0
    %244 = vmatprep.subr.bf16.mxu0 0
    %245 = vmatpush1.bf16.msra.mxu0 0
    %246 = vmatprep.subr.bf16.mxu0 0
    %247 = vmatpush1.bf16.msra.mxu0 0
    %248 = vmatprep.subr.bf16.mxu0 0
    %249 = vmatpush1.bf16.msra.mxu0 0
    %250 = vmatprep.subr.bf16.mxu0 0
    %251 = vmatpush1.bf16.msra.mxu0 0
    %252 = vmatprep.mubr.bf16.mxu0 0
    %253 = vmatmul.mubr.bf16.gmra.mrb[0].mxu0 %v209
    %v254 = vpop.f32.mrb[0].mxu0
    %v255 = vadd.f32 %v194, %v254
    %v256 = vpop.f32.mrb[0].mxu0
    %v257 = vpop.f32.mrb[0].mxu0
    %v258 = vadd.f32 %v194, %v257
    %v259 = vpop.f32.mrb[0].mxu0
    %260 = vmatprep.mubr.bf16.mxu0 0
    %261 = vmatmul.mubr.bf16.gmra.mrb[0].mxu0 %v212
    %v262 = vpop.f32.mrb[0].mxu0
    %v263 = vadd.f32 %v194, %v262
    %v264 = vpop.f32.mrb[0].mxu0
    %v265 = vpop.f32.mrb[0].mxu0
    %v266 = vadd.f32 %v194, %v265
    %v267 = vpop.f32.mrb[0].mxu0
    %268 = vmatprep.mubr.bf16.mxu0 0
    %269 = vmatmul.mubr.bf16.gmra.mrb[0].mxu0 %v215
    %v270 = vpop.f32.mrb[0].mxu0
    %v271 = vadd.f32 %v194, %v270
    %v272 = vpop.f32.mrb[0].mxu0
    %v273 = vpop.f32.mrb[0].mxu0
    %v274 = vadd.f32 %v194, %v273
    %v275 = vpop.f32.mrb[0].mxu0
    %276 = vmatprep.mubr.bf16.mxu0 0
    %277 = vmatmul.mubr.bf16.gmra.mrb[0].mxu0 %v218
    %v278 = vpop.f32.mrb[0].mxu0
    %v279 = vadd.f32 %v194, %v278
    %v280 = vpop.f32.mrb[0].mxu0
    %v281 = vpop.f32.mrb[0].mxu0
    %v282 = vadd.f32 %v194, %v281
    %v283 = vpop.f32.mrb[0].mxu0
    %284 = vdwg.mxu0
    %v285 = vld [vmem:[%s6] sm:$0xf]
    %v286 = vld [vmem:[%s6 + $0x4] sm:$0xf]
    %v287 = vld [vmem:[%s6 + $0x8] sm:$0xf]
    %v288 = vld [vmem:[%s6 + $0xc] sm:$0xf]
    %v289 = vld [vmem:[#allocation8] sm:$0x1]
    %v291 = vlaneseq
    %v292 = vshrl.u32 %v291, 7
    %v293 = vsub.s32 0, %v292
    %v294 = vrot.slane %v289, %v293
    %v300 = vunpack.c.l.b16 %v285
    %v301 = vunpack.c.l.b16 %v286
    %v302 = vunpack.c.l.b16 %v287
    %v303 = vunpack.c.l.b16 %v288
    %v304 = vpack.c.b16 %v301, %v300
    %v305 = vpack.c.b16 %v303, %v302
    %308 = vmatprep.subr.bf16.mxu0 0
    %309 = vmatpush1.bf16.msra.mxu0 %v304
    %310 = vmatprep.subr.bf16.mxu0 0
    %311 = vmatpush1.bf16.msra.mxu0 %v305
    %312 = vmatprep.subr.bf16.mxu0 0
    %313 = vmatpush1.bf16.msra.mxu0 0
    %314 = vmatprep.subr.bf16.mxu0 0
    %315 = vmatpush1.bf16.msra.mxu0 0
    %316 = vmatprep.subr.bf16.mxu0 0
    %317 = vmatpush1.bf16.msra.mxu0 0
    %318 = vmatprep.subr.bf16.mxu0 0
    %319 = vmatpush1.bf16.msra.mxu0 0
    %320 = vmatprep.subr.bf16.mxu0 0
    %321 = vmatpush1.bf16.msra.mxu0 0
    %322 = vmatprep.subr.bf16.mxu0 0
    %323 = vmatpush1.bf16.msra.mxu0 0
    %324 = vmatprep.subr.bf16.mxu0 0
    %325 = vmatpush1.bf16.msra.mxu0 0
    %326 = vmatprep.subr.bf16.mxu0 0
    %327 = vmatpush1.bf16.msra.mxu0 0
    %328 = vmatprep.subr.bf16.mxu0 0
    %329 = vmatpush1.bf16.msra.mxu0 0
    %330 = vmatprep.subr.bf16.mxu0 0
    %331 = vmatpush1.bf16.msra.mxu0 0
    %332 = vmatprep.subr.bf16.mxu0 0
    %333 = vmatpush1.bf16.msra.mxu0 0
    %334 = vmatprep.subr.bf16.mxu0 0
    %335 = vmatpush1.bf16.msra.mxu0 0
    %336 = vmatprep.subr.bf16.mxu0 0
    %337 = vmatpush1.bf16.msra.mxu0 0
    %338 = vmatprep.subr.bf16.mxu0 0
    %339 = vmatpush1.bf16.msra.mxu0 0
    %340 = vmatprep.mubr.bf16.mxu0 0
    %341 = vmatmul.mubr.bf16.gmra.mrb[0].mxu0 %v209
    %v342 = vpop.f32.mrb[0].mxu0
    %v343 = vadd.f32 %v294, %v342
    %v344 = vpop.f32.mrb[0].mxu0
    %v345 = vpop.f32.mrb[0].mxu0
    %v346 = vadd.f32 %v294, %v345
    %v347 = vpop.f32.mrb[0].mxu0
    %348 = vmatprep.mubr.bf16.mxu0 0
    %349 = vmatmul.mubr.bf16.gmra.mrb[0].mxu0 %v212
    %v350 = vpop.f32.mrb[0].mxu0
    %v351 = vadd.f32 %v294, %v350
    %v352 = vpop.f32.mrb[0].mxu0
    %v353 = vpop.f32.mrb[0].mxu0
    %v354 = vadd.f32 %v294, %v353
    %v355 = vpop.f32.mrb[0].mxu0
    %356 = vmatprep.mubr.bf16.mxu0 0
    %357 = vmatmul.mubr.bf16.gmra.mrb[0].mxu0 %v215
    %v358 = vpop.f32.mrb[0].mxu0
    %v359 = vadd.f32 %v294, %v358
    %v360 = vpop.f32.mrb[0].mxu0
    %v361 = vpop.f32.mrb[0].mxu0
    %v362 = vadd.f32 %v294, %v361
    %v363 = vpop.f32.mrb[0].mxu0
    %364 = vmatprep.mubr.bf16.mxu0 0
    %365 = vmatmul.mubr.bf16.gmra.mrb[0].mxu0 %v218
    %v366 = vpop.f32.mrb[0].mxu0
    %v367 = vadd.f32 %v294, %v366
    %v368 = vpop.f32.mrb[0].mxu0
    %v369 = vpop.f32.mrb[0].mxu0
    %v370 = vadd.f32 %v294, %v369
    %v371 = vpop.f32.mrb[0].mxu0
    %372 = vdwg.mxu0
    %v374 = vcombine.high %v172, %v172
    %v376 = vunpack.c.l.s4 1966171168
    %v377 = vunpack.c.0.s8 %v376
    %v378 = vlaneseq
    %v379 = vshrl.u32 %v378, 7
    %v380 = vsub.s32 %v377, %v379
    %v381 = vrot.slane %v172, %v380
    %v383 = vunpack.c.l.s4 1966171168
    %v384 = vunpack.c.0.s8 %v383
    %v385 = vlaneseq
    %v386 = vshrl.u32 %v385, 7
    %v387 = vsub.s32 %v384, %v386
    %v388 = vrot.slane %v374, %v387
    %v389 = vcombine.high %v381, %v381
    %v390 = vcombine.high %v388, %v388
    %v392 = vunpack.c.l.s4 1966171168
    %v393 = vunpack.c.0.s8 %v392
    %v394 = vlaneseq
    %v395 = vshrl.u32 %v394, 7
    %v396 = vsub.s32 %v393, %v395
    %v397 = vrot.slane %v381, %v396
    %v399 = vunpack.c.l.s4 1966171168
    %v400 = vunpack.c.0.s8 %v399
    %v401 = vlaneseq
    %v402 = vshrl.u32 %v401, 7
    %v403 = vsub.s32 %v400, %v402
    %v404 = vrot.slane %v388, %v403
    %v406 = vunpack.c.l.s4 1966171168
    %v407 = vunpack.c.0.s8 %v406
    %v408 = vlaneseq
    %v409 = vshrl.u32 %v408, 7
    %v410 = vsub.s32 %v407, %v409
    %v411 = vrot.slane %v389, %v410
    %v413 = vunpack.c.l.s4 1966171168
    %v414 = vunpack.c.0.s8 %v413
    %v415 = vlaneseq
    %v416 = vshrl.u32 %v415, 7
    %v417 = vsub.s32 %v414, %v416
    %v418 = vrot.slane %v390, %v417
    %v419 = vcombine.high %v397, %v397
    %v420 = vcombine.high %v404, %v404
    %v421 = vcombine.high %v411, %v411
    %v422 = vcombine.high %v418, %v418
    %v423 = vlaneseq
    %v424 = vshrl.u32 %v423, 7
    %v425 = vsub.s32 0, %v424
    %v426 = vrot.slane %v397, %v425
    %v427 = vlaneseq
    %v428 = vshrl.u32 %v427, 7
    %v429 = vsub.s32 0, %v428
    %v430 = vrot.slane %v411, %v429
    %v431 = vlaneseq
    %v432 = vshrl.u32 %v431, 7
    %v433 = vsub.s32 0, %v432
    %v434 = vrot.slane %v419, %v433
    %v435 = vlaneseq
    %v436 = vshrl.u32 %v435, 7
    %v437 = vsub.s32 0, %v436
    %v438 = vrot.slane %v421, %v437
    %v439 = vlaneseq
    %v440 = vshrl.u32 %v439, 7
    %v441 = vsub.s32 0, %v440
    %v442 = vrot.slane %v404, %v441
    %v443 = vlaneseq
    %v444 = vshrl.u32 %v443, 7
    %v445 = vsub.s32 0, %v444
    %v446 = vrot.slane %v418, %v445
    %v447 = vlaneseq
    %v448 = vshrl.u32 %v447, 7
    %v449 = vsub.s32 0, %v448
    %v450 = vrot.slane %v420, %v449
    %v451 = vlaneseq
    %v452 = vshrl.u32 %v451, 7
    %v453 = vsub.s32 0, %v452
    %v454 = vrot.slane %v422, %v453
    %v463 = vmul.f32 %v255, %v426
    %v464 = vmul.f32 %v258, %v430
    %v465 = vmul.f32 %v263, %v434
    %v466 = vmul.f32 %v266, %v438
    %v467 = vmul.f32 %v271, %v442
    %v468 = vmul.f32 %v274, %v446
    %v469 = vmul.f32 %v279, %v450
    %v470 = vmul.f32 %v282, %v454
    %v471 = vld [vmem:[%s10] sm:$0xff]
    %v472 = vld [vmem:[%s10 + $0x8] sm:$0xff]
    %v473 = vld [vmem:[%s10 + $0x10] sm:$0xff]
    %v474 = vld [vmem:[%s10 + $0x18] sm:$0xff]
    %v476 = vsel %vm128, %v463, 0
    %v479 = vsel %vm128, %v464, 0
    %v482 = vsel %vm128, %v465, 0
    %v485 = vsel %vm128, %v466, 0
    %v488 = vsel %vm128, %v467, 0
    %v491 = vsel %vm128, %v468, 0
    %v494 = vsel %vm128, %v469, 0
    %v497 = vsel %vm128, %v470, 0
    %499 = vmatprep.subr.mxu0 0.0
    %500 = vmatpush1.msra.mxu0 %v471
    %501 = vmatprep.subr.mxu0 0.0
    %502 = vmatpush1.msra.mxu0 %v472
    %503 = vmatprep.subr.mxu0 0.0
    %504 = vmatpush1.msra.mxu0 %v473
    %505 = vmatprep.subr.mxu0 0.0
    %506 = vmatpush1.msra.mxu0 %v474
    %507 = vmatprep.subr.mxu0 0.0
    %508 = vmatpush1.msra.mxu0 0.0
    %509 = vmatprep.subr.mxu0 0.0
    %510 = vmatpush1.msra.mxu0 0.0
    %511 = vmatprep.subr.mxu0 0.0
    %512 = vmatpush1.msra.mxu0 0.0
    %513 = vmatprep.subr.mxu0 0.0
    %514 = vmatpush1.msra.mxu0 0.0
    %515 = vmatprep.subr.mxu0 0.0
    %516 = vmatpush1.msra.mxu0 0.0
    %517 = vmatprep.subr.mxu0 0.0
    %518 = vmatpush1.msra.mxu0 0.0
    %519 = vmatprep.subr.mxu0 0.0
    %520 = vmatpush1.msra.mxu0 0.0
    %521 = vmatprep.subr.mxu0 0.0
    %522 = vmatpush1.msra.mxu0 0.0
    %523 = vmatprep.subr.mxu0 0.0
    %524 = vmatpush1.msra.mxu0 0.0
    %525 = vmatprep.subr.mxu0 0.0
    %526 = vmatpush1.msra.mxu0 0.0
    %527 = vmatprep.subr.mxu0 0.0
    %528 = vmatpush1.msra.mxu0 0.0
    %529 = vmatprep.subr.mxu0 0.0
    %530 = vmatpush1.msra.mxu0 0.0
    %531 = vmatprep.subr.mxu0 0.0
    %532 = vmatpush1.msra.mxu0 0.0
    %533 = vmatprep.subr.mxu0 0.0
    %534 = vmatpush1.msra.mxu0 0.0
    %535 = vmatprep.subr.mxu0 0.0
    %536 = vmatpush1.msra.mxu0 0.0
    %537 = vmatprep.subr.mxu0 0.0
    %538 = vmatpush1.msra.mxu0 0.0
    %539 = vmatprep.subr.mxu0 0.0
    %540 = vmatpush1.msra.mxu0 0.0
    %541 = vmatprep.subr.mxu0 0.0
    %542 = vmatpush1.msra.mxu0 0.0
    %543 = vmatprep.subr.mxu0 0.0
    %544 = vmatpush1.msra.mxu0 0.0
    %545 = vmatprep.subr.mxu0 0.0
    %546 = vmatpush1.msra.mxu0 0.0
    %547 = vmatprep.subr.mxu0 0.0
    %548 = vmatpush1.msra.mxu0 0.0
    %549 = vmatprep.subr.mxu0 0.0
    %550 = vmatpush1.msra.mxu0 0.0
    %551 = vmatprep.subr.mxu0 0.0
    %552 = vmatpush1.msra.mxu0 0.0
    %553 = vmatprep.subr.mxu0 0.0
    %554 = vmatpush1.msra.mxu0 0.0
    %555 = vmatprep.subr.mxu0 0.0
    %556 = vmatpush1.msra.mxu0 0.0
    %557 = vmatprep.subr.mxu0 0.0
    %558 = vmatpush1.msra.mxu0 0.0
    %559 = vmatprep.subr.mxu0 0.0
    %560 = vmatpush1.msra.mxu0 0.0
    %561 = vmatprep.subr.mxu0 0.0
    %562 = vmatpush1.msra.mxu0 0.0
    %563 = vmatprep.mubr.f32.mxu0 0.0
    %564 = vmatmul.mubr.f32.gmra.mrb[0].mxu0 %v476
    %v565 = vpop.f32.mrb[0].mxu0
    %v566 = vadd.f32 0.0, %v565
    %v567 = vpop.f32.mrb[0].mxu0
    %568 = vmatprep.mubr.f32.mxu0 0.0
    %569 = vmatmul.mubr.f32.gmra.mrb[0].mxu0 %v479
    %v570 = vpop.f32.mrb[0].mxu0
    %v571 = vadd.f32 0.0, %v570
    %v572 = vpop.f32.mrb[0].mxu0
    %573 = vmatprep.mubr.f32.mxu0 0.0
    %574 = vmatmul.mubr.f32.gmra.mrb[0].mxu0 %v482
    %v575 = vpop.f32.mrb[0].mxu0
    %v576 = vadd.f32 0.0, %v575
    %v577 = vpop.f32.mrb[0].mxu0
    %578 = vmatprep.mubr.f32.mxu0 0.0
    %579 = vmatmul.mubr.f32.gmra.mrb[0].mxu0 %v485
    %v580 = vpop.f32.mrb[0].mxu0
    %v581 = vadd.f32 0.0, %v580
    %v582 = vpop.f32.mrb[0].mxu0
    %583 = vmatprep.mubr.f32.mxu0 0.0
    %584 = vmatmul.mubr.f32.gmra.mrb[0].mxu0 %v488
    %v585 = vpop.f32.mrb[0].mxu0
    %v586 = vadd.f32 0.0, %v585
    %v587 = vpop.f32.mrb[0].mxu0
    %588 = vmatprep.mubr.f32.mxu0 0.0
    %589 = vmatmul.mubr.f32.gmra.mrb[0].mxu0 %v491
    %v590 = vpop.f32.mrb[0].mxu0
    %v591 = vadd.f32 0.0, %v590
    %v592 = vpop.f32.mrb[0].mxu0
    %593 = vmatprep.mubr.f32.mxu0 0.0
    %594 = vmatmul.mubr.f32.gmra.mrb[0].mxu0 %v494
    %v595 = vpop.f32.mrb[0].mxu0
    %v596 = vadd.f32 0.0, %v595
    %v597 = vpop.f32.mrb[0].mxu0
    %598 = vmatprep.mubr.f32.mxu0 0.0
    %599 = vmatmul.mubr.f32.gmra.mrb[0].mxu0 %v497
    %v600 = vpop.f32.mrb[0].mxu0
    %v601 = vadd.f32 0.0, %v600
    %v602 = vpop.f32.mrb[0].mxu0
    %603 = vdwg.mxu0
    %vm604 = vcmask 31744
    %v605 = vsel %vm604, %v566, -inf
    %v606 = vrot.slane %v605, 4
    %v607 = vmax.f32 %v605, %v606
    %v608 = vrot.slane %v607, 2
    %v609 = vmax.f32 %v607, %v608
    %v610 = vrot.slane %v609, 1
    %v611 = vmax.f32 %v609, %v610
    %v612 = vsel %vm604, %v571, -inf
    %v613 = vrot.slane %v612, 4
    %v614 = vmax.f32 %v612, %v613
    %v615 = vrot.slane %v614, 2
    %v616 = vmax.f32 %v614, %v615
    %v617 = vrot.slane %v616, 1
    %v618 = vmax.f32 %v616, %v617
    %v619 = vsel %vm604, %v576, -inf
    %v620 = vrot.slane %v619, 4
    %v621 = vmax.f32 %v619, %v620
    %v622 = vrot.slane %v621, 2
    %v623 = vmax.f32 %v621, %v622
    %v624 = vrot.slane %v623, 1
    %v625 = vmax.f32 %v623, %v624
    %v626 = vsel %vm604, %v581, -inf
    %v627 = vrot.slane %v626, 4
    %v628 = vmax.f32 %v626, %v627
    %v629 = vrot.slane %v628, 2
    %v630 = vmax.f32 %v628, %v629
    %v631 = vrot.slane %v630, 1
    %v632 = vmax.f32 %v630, %v631
    %v633 = vsel %vm604, %v586, -inf
    %v634 = vrot.slane %v633, 4
    %v635 = vmax.f32 %v633, %v634
    %v636 = vrot.slane %v635, 2
    %v637 = vmax.f32 %v635, %v636
    %v638 = vrot.slane %v637, 1
    %v639 = vmax.f32 %v637, %v638
    %v640 = vsel %vm604, %v591, -inf
    %v641 = vrot.slane %v640, 4
    %v642 = vmax.f32 %v640, %v641
    %v643 = vrot.slane %v642, 2
    %v644 = vmax.f32 %v642, %v643
    %v645 = vrot.slane %v644, 1
    %v646 = vmax.f32 %v644, %v645
    %v647 = vsel %vm604, %v596, -inf
    %v648 = vrot.slane %v647, 4
    %v649 = vmax.f32 %v647, %v648
    %v650 = vrot.slane %v649, 2
    %v651 = vmax.f32 %v649, %v650
    %v652 = vrot.slane %v651, 1
    %v653 = vmax.f32 %v651, %v652
    %v654 = vsel %vm604, %v601, -inf
    %v655 = vrot.slane %v654, 4
    %v656 = vmax.f32 %v654, %v655
    %v657 = vrot.slane %v656, 2
    %v658 = vmax.f32 %v656, %v657
    %v659 = vrot.slane %v658, 1
    %v660 = vmax.f32 %v658, %v659
    %v661 = vsub.f32 %v566, %v611
    %v662 = vsub.f32 %v571, %v618
    %v663 = vsub.f32 %v576, %v625
    %v664 = vsub.f32 %v581, %v632
    %v665 = vsub.f32 %v586, %v639
    %v666 = vsub.f32 %v591, %v646
    %v667 = vsub.f32 %v596, %v653
    %v668 = vsub.f32 %v601, %v660
    %v669 = vmul.f32 %v661, 1.442695
    %v670 = vpow.pop %v669
    %v671 = vmul.f32 %v662, 1.442695
    %v672 = vpow.pop %v671
    %v673 = vmul.f32 %v663, 1.442695
    %v674 = vpow.pop %v673
    %v675 = vmul.f32 %v664, 1.442695
    %v676 = vpow.pop %v675
    %v677 = vmul.f32 %v665, 1.442695
    %v678 = vpow.pop %v677
    %v679 = vmul.f32 %v666, 1.442695
    %v680 = vpow.pop %v679
    %v681 = vmul.f32 %v667, 1.442695
    %v682 = vpow.pop %v681
    %v683 = vmul.f32 %v668, 1.442695
    %v684 = vpow.pop %v683
    %v685 = vsel %vm604, %v670, 0.0
    %v686 = vrot.slane %v685, 4
    %v687 = vadd.f32 %v685, %v686
    %v688 = vrot.slane %v687, 2
    %v689 = vadd.f32 %v687, %v688
    %v690 = vrot.slane %v689, 1
    %v691 = vadd.f32 %v689, %v690
    %v692 = vsel %vm604, %v672, 0.0
    %v693 = vrot.slane %v692, 4
    %v694 = vadd.f32 %v692, %v693
    %v695 = vrot.slane %v694, 2
    %v696 = vadd.f32 %v694, %v695
    %v697 = vrot.slane %v696, 1
    %v698 = vadd.f32 %v696, %v697
    %v699 = vsel %vm604, %v674, 0.0
    %v700 = vrot.slane %v699, 4
    %v701 = vadd.f32 %v699, %v700
    %v702 = vrot.slane %v701, 2
    %v703 = vadd.f32 %v701, %v702
    %v704 = vrot.slane %v703, 1
    %v705 = vadd.f32 %v703, %v704
    %v706 = vsel %vm604, %v676, 0.0
    %v707 = vrot.slane %v706, 4
    %v708 = vadd.f32 %v706, %v707
    %v709 = vrot.slane %v708, 2
    %v710 = vadd.f32 %v708, %v709
    %v711 = vrot.slane %v710, 1
    %v712 = vadd.f32 %v710, %v711
    %v713 = vsel %vm604, %v678, 0.0
    %v714 = vrot.slane %v713, 4
    %v715 = vadd.f32 %v713, %v714
    %v716 = vrot.slane %v715, 2
    %v717 = vadd.f32 %v715, %v716
    %v718 = vrot.slane %v717, 1
    %v719 = vadd.f32 %v717, %v718
    %v720 = vsel %vm604, %v680, 0.0
    %v721 = vrot.slane %v720, 4
    %v722 = vadd.f32 %v720, %v721
    %v723 = vrot.slane %v722, 2
    %v724 = vadd.f32 %v722, %v723
    %v725 = vrot.slane %v724, 1
    %v726 = vadd.f32 %v724, %v725
    %v727 = vsel %vm604, %v682, 0.0
    %v728 = vrot.slane %v727, 4
    %v729 = vadd.f32 %v727, %v728
    %v730 = vrot.slane %v729, 2
    %v731 = vadd.f32 %v729, %v730
    %v732 = vrot.slane %v731, 1
    %v733 = vadd.f32 %v731, %v732
    %v734 = vsel %vm604, %v684, 0.0
    %v735 = vrot.slane %v734, 4
    %v736 = vadd.f32 %v734, %v735
    %v737 = vrot.slane %v736, 2
    %v738 = vadd.f32 %v736, %v737
    %v739 = vrot.slane %v738, 1
    %v740 = vadd.f32 %v738, %v739
    %v741 = vpack.c.bf16 %v670, %v670
    %v742 = vpack.c.bf16 %v672, %v672
    %v743 = vpack.c.bf16 %v674, %v674
    %v744 = vpack.c.bf16 %v676, %v676
    %v745 = vpack.c.bf16 %v678, %v678
    %v746 = vpack.c.bf16 %v680, %v680
    %v747 = vpack.c.bf16 %v682, %v682
    %v748 = vpack.c.bf16 %v684, %v684
    %v749 = vpack.c.bf16 %v343, %v343
    %v750 = vpack.c.bf16 %v346, %v346
    %v751 = vpack.c.bf16 %v351, %v351
    %v752 = vpack.c.bf16 %v354, %v354
    %v753 = vpack.c.bf16 %v359, %v359
    %v754 = vpack.c.bf16 %v362, %v362
    %v755 = vpack.c.bf16 %v367, %v367
    %v756 = vpack.c.bf16 %v370, %v370
    %757 = vxpose.xlu0.c.b16.start [1/8] %v741, 128
    %758 = vxpose.xlu0.c.b16.cont [2/8] 0, 128
    %759 = vxpose.xlu0.c.b16.cont [3/8] 0, 128
    %760 = vxpose.xlu0.c.b16.cont [4/8] 0, 128
    %761 = vxpose.xlu0.c.b16.cont [5/8] 0, 128
    %762 = vxpose.xlu0.c.b16.cont [6/8] 0, 128
    %763 = vxpose.xlu0.c.b16.cont [7/8] 0, 128
    %764 = vxpose.xlu0.c.b16.end [8/8] 0, 128
    %v765 = vpop.trf.xlu0
    %v766 = vpop.trf.xlu0
    %v767 = vpop.trf.xlu0
    %v768 = vpop.trf.xlu0
    %v769 = vpop.trf.xlu0
    %v770 = vpop.trf.xlu0
    %v771 = vpop.trf.xlu0
    %v772 = vpop.trf.xlu0
    %vm773 = vcmask 64512
    %v775 = vsel %vm773, %v765, 0
    %vm777 = vcmask 1043456
    %v779 = vsel %vm777, %v749, 0
    %781 = vmatprep.subr.bf16.mxu0 0
    %782 = vmatpush1.bf16.msra.mxu0 %v779
    %783 = vmatprep.subr.bf16.mxu0 0
    %784 = vmatpush1.bf16.msra.mxu0 0
    %785 = vmatprep.subr.bf16.mxu0 0
    %786 = vmatpush1.bf16.msra.mxu0 0
    %787 = vmatprep.subr.bf16.mxu0 0
    %788 = vmatpush1.bf16.msra.mxu0 0
    %789 = vmatprep.subr.bf16.mxu0 0
    %790 = vmatpush1.bf16.msra.mxu0 0
    %791 = vmatprep.subr.bf16.mxu0 0
    %792 = vmatpush1.bf16.msra.mxu0 0
    %793 = vmatprep.subr.bf16.mxu0 0
    %794 = vmatpush1.bf16.msra.mxu0 0
    %795 = vmatprep.subr.bf16.mxu0 0
    %796 = vmatpush1.bf16.msra.mxu0 0
    %797 = vmatprep.subr.bf16.mxu0 0
    %798 = vmatpush1.bf16.msra.mxu0 0
    %799 = vmatprep.subr.bf16.mxu0 0
    %800 = vmatpush1.bf16.msra.mxu0 0
    %801 = vmatprep.subr.bf16.mxu0 0
    %802 = vmatpush1.bf16.msra.mxu0 0
    %803 = vmatprep.subr.bf16.mxu0 0
    %804 = vmatpush1.bf16.msra.mxu0 0
    %805 = vmatprep.subr.bf16.mxu0 0
    %806 = vmatpush1.bf16.msra.mxu0 0
    %807 = vmatprep.subr.bf16.mxu0 0
    %808 = vmatpush1.bf16.msra.mxu0 0
    %809 = vmatprep.subr.bf16.mxu0 0
    %810 = vmatpush1.bf16.msra.mxu0 0
    %811 = vmatprep.subr.bf16.mxu0 0
    %812 = vmatpush1.bf16.msra.mxu0 0
    %813 = vmatprep.mubr.bf16.mxu0 0
    %814 = vmatmul.mubr.bf16.gmra.mrb[0].mxu0 %v775
    %v815 = vpop.f32.mrb[0].mxu0
    %v816 = vadd.f32 0.0, %v815
    %v817 = vpop.f32.mrb[0].mxu0
    %v818 = vpop.f32.mrb[0].mxu0
    %v819 = vpop.f32.mrb[0].mxu0
    %820 = vdwg.mxu0
    %821 = vxpose.xlu0.c.b16.start [1/8] %v742, 128
    %822 = vxpose.xlu0.c.b16.cont [2/8] 0, 128
    %823 = vxpose.xlu0.c.b16.cont [3/8] 0, 128
    %824 = vxpose.xlu0.c.b16.cont [4/8] 0, 128
    %825 = vxpose.xlu0.c.b16.cont [5/8] 0, 128
    %826 = vxpose.xlu0.c.b16.cont [6/8] 0, 128
    %827 = vxpose.xlu0.c.b16.cont [7/8] 0, 128
    %828 = vxpose.xlu0.c.b16.end [8/8] 0, 128
    %v829 = vpop.trf.xlu0
    %v830 = vpop.trf.xlu0
    %v831 = vpop.trf.xlu0
    %v832 = vpop.trf.xlu0
    %v833 = vpop.trf.xlu0
    %v834 = vpop.trf.xlu0
    %v835 = vpop.trf.xlu0
    %v836 = vpop.trf.xlu0
    %v838 = vsel %vm773, %v829, 0
    %v841 = vsel %vm777, %v750, 0
    %843 = vmatprep.subr.bf16.mxu0 0
    %844 = vmatpush1.bf16.msra.mxu0 %v841
    %845 = vmatprep.subr.bf16.mxu0 0
    %846 = vmatpush1.bf16.msra.mxu0 0
    %847 = vmatprep.subr.bf16.mxu0 0
    %848 = vmatpush1.bf16.msra.mxu0 0
    %849 = vmatprep.subr.bf16.mxu0 0
    %850 = vmatpush1.bf16.msra.mxu0 0
    %851 = vmatprep.subr.bf16.mxu0 0
    %852 = vmatpush1.bf16.msra.mxu0 0
    %853 = vmatprep.subr.bf16.mxu0 0
    %854 = vmatpush1.bf16.msra.mxu0 0
    %855 = vmatprep.subr.bf16.mxu0 0
    %856 = vmatpush1.bf16.msra.mxu0 0
    %857 = vmatprep.subr.bf16.mxu0 0
    %858 = vmatpush1.bf16.msra.mxu0 0
    %859 = vmatprep.subr.bf16.mxu0 0
    %860 = vmatpush1.bf16.msra.mxu0 0
    %861 = vmatprep.subr.bf16.mxu0 0
    %862 = vmatpush1.bf16.msra.mxu0 0
    %863 = vmatprep.subr.bf16.mxu0 0
    %864 = vmatpush1.bf16.msra.mxu0 0
    %865 = vmatprep.subr.bf16.mxu0 0
    %866 = vmatpush1.bf16.msra.mxu0 0
    %867 = vmatprep.subr.bf16.mxu0 0
    %868 = vmatpush1.bf16.msra.mxu0 0
    %869 = vmatprep.subr.bf16.mxu0 0
    %870 = vmatpush1.bf16.msra.mxu0 0
    %871 = vmatprep.subr.bf16.mxu0 0
    %872 = vmatpush1.bf16.msra.mxu0 0
    %873 = vmatprep.subr.bf16.mxu0 0
    %874 = vmatpush1.bf16.msra.mxu0 0
    %875 = vmatprep.mubr.bf16.mxu0 0
    %876 = vmatmul.mubr.bf16.gmra.mrb[0].mxu0 %v838
    %v877 = vpop.f32.mrb[0].mxu0
    %v878 = vadd.f32 0.0, %v877
    %v879 = vpop.f32.mrb[0].mxu0
    %v880 = vpop.f32.mrb[0].mxu0
    %v881 = vpop.f32.mrb[0].mxu0
    %882 = vdwg.mxu0
    %883 = vxpose.xlu0.c.b16.start [1/8] %v743, 128
    %884 = vxpose.xlu0.c.b16.cont [2/8] 0, 128
    %885 = vxpose.xlu0.c.b16.cont [3/8] 0, 128
    %886 = vxpose.xlu0.c.b16.cont [4/8] 0, 128
    %887 = vxpose.xlu0.c.b16.cont [5/8] 0, 128
    %888 = vxpose.xlu0.c.b16.cont [6/8] 0, 128
    %889 = vxpose.xlu0.c.b16.cont [7/8] 0, 128
    %890 = vxpose.xlu0.c.b16.end [8/8] 0, 128
    %v891 = vpop.trf.xlu0
    %v892 = vpop.trf.xlu0
    %v893 = vpop.trf.xlu0
    %v894 = vpop.trf.xlu0
    %v895 = vpop.trf.xlu0
    %v896 = vpop.trf.xlu0
    %v897 = vpop.trf.xlu0
    %v898 = vpop.trf.xlu0
    %v900 = vsel %vm773, %v891, 0
    %v903 = vsel %vm777, %v751, 0
    %905 = vmatprep.subr.bf16.mxu0 0
    %906 = vmatpush1.bf16.msra.mxu0 %v903
    %907 = vmatprep.subr.bf16.mxu0 0
    %908 = vmatpush1.bf16.msra.mxu0 0
    %909 = vmatprep.subr.bf16.mxu0 0
    %910 = vmatpush1.bf16.msra.mxu0 0
    %911 = vmatprep.subr.bf16.mxu0 0
    %912 = vmatpush1.bf16.msra.mxu0 0
    %913 = vmatprep.subr.bf16.mxu0 0
    %914 = vmatpush1.bf16.msra.mxu0 0
    %915 = vmatprep.subr.bf16.mxu0 0
    %916 = vmatpush1.bf16.msra.mxu0 0
    %917 = vmatprep.subr.bf16.mxu0 0
    %918 = vmatpush1.bf16.msra.mxu0 0
    %919 = vmatprep.subr.bf16.mxu0 0
    %920 = vmatpush1.bf16.msra.mxu0 0
    %921 = vmatprep.subr.bf16.mxu0 0
    %922 = vmatpush1.bf16.msra.mxu0 0
    %923 = vmatprep.subr.bf16.mxu0 0
    %924 = vmatpush1.bf16.msra.mxu0 0
    %925 = vmatprep.subr.bf16.mxu0 0
    %926 = vmatpush1.bf16.msra.mxu0 0
    %927 = vmatprep.subr.bf16.mxu0 0
    %928 = vmatpush1.bf16.msra.mxu0 0
    %929 = vmatprep.subr.bf16.mxu0 0
    %930 = vmatpush1.bf16.msra.mxu0 0
    %931 = vmatprep.subr.bf16.mxu0 0
    %932 = vmatpush1.bf16.msra.mxu0 0
    %933 = vmatprep.subr.bf16.mxu0 0
    %934 = vmatpush1.bf16.msra.mxu0 0
    %935 = vmatprep.subr.bf16.mxu0 0
    %936 = vmatpush1.bf16.msra.mxu0 0
    %937 = vmatprep.mubr.bf16.mxu0 0
    %938 = vmatmul.mubr.bf16.gmra.mrb[0].mxu0 %v900
    %v939 = vpop.f32.mrb[0].mxu0
    %v940 = vadd.f32 0.0, %v939
    %v941 = vpop.f32.mrb[0].mxu0
    %v942 = vpop.f32.mrb[0].mxu0
    %v943 = vpop.f32.mrb[0].mxu0
    %944 = vdwg.mxu0
    %945 = vxpose.xlu0.c.b16.start [1/8] %v744, 128
    %946 = vxpose.xlu0.c.b16.cont [2/8] 0, 128
    %947 = vxpose.xlu0.c.b16.cont [3/8] 0, 128
    %948 = vxpose.xlu0.c.b16.cont [4/8] 0, 128
    %949 = vxpose.xlu0.c.b16.cont [5/8] 0, 128
    %950 = vxpose.xlu0.c.b16.cont [6/8] 0, 128
    %951 = vxpose.xlu0.c.b16.cont [7/8] 0, 128
    %952 = vxpose.xlu0.c.b16.end [8/8] 0, 128
    %v953 = vpop.trf.xlu0
    %v954 = vpop.trf.xlu0
    %v955 = vpop.trf.xlu0
    %v956 = vpop.trf.xlu0
    %v957 = vpop.trf.xlu0
    %v958 = vpop.trf.xlu0
    %v959 = vpop.trf.xlu0
    %v960 = vpop.trf.xlu0
    %v962 = vsel %vm773, %v953, 0
    %v965 = vsel %vm777, %v752, 0
    %967 = vmatprep.subr.bf16.mxu0 0
    %968 = vmatpush1.bf16.msra.mxu0 %v965
    %969 = vmatprep.subr.bf16.mxu0 0
    %970 = vmatpush1.bf16.msra.mxu0 0
    %971 = vmatprep.subr.bf16.mxu0 0
    %972 = vmatpush1.bf16.msra.mxu0 0
    %973 = vmatprep.subr.bf16.mxu0 0
    %974 = vmatpush1.bf16.msra.mxu0 0
    %975 = vmatprep.subr.bf16.mxu0 0
    %976 = vmatpush1.bf16.msra.mxu0 0
    %977 = vmatprep.subr.bf16.mxu0 0
    %978 = vmatpush1.bf16.msra.mxu0 0
    %979 = vmatprep.subr.bf16.mxu0 0
    %980 = vmatpush1.bf16.msra.mxu0 0
    %981 = vmatprep.subr.bf16.mxu0 0
    %982 = vmatpush1.bf16.msra.mxu0 0
    %983 = vmatprep.subr.bf16.mxu0 0
    %984 = vmatpush1.bf16.msra.mxu0 0
    %985 = vmatprep.subr.bf16.mxu0 0
    %986 = vmatpush1.bf16.msra.mxu0 0
    %987 = vmatprep.subr.bf16.mxu0 0
    %988 = vmatpush1.bf16.msra.mxu0 0
    %989 = vmatprep.subr.bf16.mxu0 0
    %990 = vmatpush1.bf16.msra.mxu0 0
    %991 = vmatprep.subr.bf16.mxu0 0
    %992 = vmatpush1.bf16.msra.mxu0 0
    %993 = vmatprep.subr.bf16.mxu0 0
    %994 = vmatpush1.bf16.msra.mxu0 0
    %995 = vmatprep.subr.bf16.mxu0 0
    %996 = vmatpush1.bf16.msra.mxu0 0
    %997 = vmatprep.subr.bf16.mxu0 0
    %998 = vmatpush1.bf16.msra.mxu0 0
    %999 = vmatprep.mubr.bf16.mxu0 0
    %1000 = vmatmul.mubr.bf16.gmra.mrb[0].mxu0 %v962
    %v1001 = vpop.f32.mrb[0].mxu0
    %v1002 = vadd.f32 0.0, %v1001
    %v1003 = vpop.f32.mrb[0].mxu0
    %v1004 = vpop.f32.mrb[0].mxu0
    %v1005 = vpop.f32.mrb[0].mxu0
    %1006 = vdwg.mxu0
    %1007 = vxpose.xlu0.c.b16.start [1/8] %v745, 128
    %1008 = vxpose.xlu0.c.b16.cont [2/8] 0, 128
    %1009 = vxpose.xlu0.c.b16.cont [3/8] 0, 128
    %1010 = vxpose.xlu0.c.b16.cont [4/8] 0, 128
    %1011 = vxpose.xlu0.c.b16.cont [5/8] 0, 128
    %1012 = vxpose.xlu0.c.b16.cont [6/8] 0, 128
    %1013 = vxpose.xlu0.c.b16.cont [7/8] 0, 128
    %1014 = vxpose.xlu0.c.b16.end [8/8] 0, 128
    %v1015 = vpop.trf.xlu0
    %v1016 = vpop.trf.xlu0
    %v1017 = vpop.trf.xlu0
    %v1018 = vpop.trf.xlu0
    %v1019 = vpop.trf.xlu0
    %v1020 = vpop.trf.xlu0
    %v1021 = vpop.trf.xlu0
    %v1022 = vpop.trf.xlu0
    %v1024 = vsel %vm773, %v1015, 0
    %v1027 = vsel %vm777, %v753, 0
    %1029 = vmatprep.subr.bf16.mxu0 0
    %1030 = vmatpush1.bf16.msra.mxu0 %v1027
    %1031 = vmatprep.subr.bf16.mxu0 0
    %1032 = vmatpush1.bf16.msra.mxu0 0
    %1033 = vmatprep.subr.bf16.mxu0 0
    %1034 = vmatpush1.bf16.msra.mxu0 0
    %1035 = vmatprep.subr.bf16.mxu0 0
    %1036 = vmatpush1.bf16.msra.mxu0 0
    %1037 = vmatprep.subr.bf16.mxu0 0
    %1038 = vmatpush1.bf16.msra.mxu0 0
    %1039 = vmatprep.subr.bf16.mxu0 0
    %1040 = vmatpush1.bf16.msra.mxu0 0
    %1041 = vmatprep.subr.bf16.mxu0 0
    %1042 = vmatpush1.bf16.msra.mxu0 0
    %1043 = vmatprep.subr.bf16.mxu0 0
    %1044 = vmatpush1.bf16.msra.mxu0 0
    %1045 = vmatprep.subr.bf16.mxu0 0
    %1046 = vmatpush1.bf16.msra.mxu0 0
    %1047 = vmatprep.subr.bf16.mxu0 0
    %1048 = vmatpush1.bf16.msra.mxu0 0
    %1049 = vmatprep.subr.bf16.mxu0 0
    %1050 = vmatpush1.bf16.msra.mxu0 0
    %1051 = vmatprep.subr.bf16.mxu0 0
    %1052 = vmatpush1.bf16.msra.mxu0 0
    %1053 = vmatprep.subr.bf16.mxu0 0
    %1054 = vmatpush1.bf16.msra.mxu0 0
    %1055 = vmatprep.subr.bf16.mxu0 0
    %1056 = vmatpush1.bf16.msra.mxu0 0
    %1057 = vmatprep.subr.bf16.mxu0 0
    %1058 = vmatpush1.bf16.msra.mxu0 0
    %1059 = vmatprep.subr.bf16.mxu0 0
    %1060 = vmatpush1.bf16.msra.mxu0 0
    %1061 = vmatprep.mubr.bf16.mxu0 0
    %1062 = vmatmul.mubr.bf16.gmra.mrb[0].mxu0 %v1024
    %v1063 = vpop.f32.mrb[0].mxu0
    %v1064 = vadd.f32 0.0, %v1063
    %v1065 = vpop.f32.mrb[0].mxu0
    %v1066 = vpop.f32.mrb[0].mxu0
    %v1067 = vpop.f32.mrb[0].mxu0
    %1068 = vdwg.mxu0
    %1069 = vxpose.xlu0.c.b16.start [1/8] %v746, 128
    %1070 = vxpose.xlu0.c.b16.cont [2/8] 0, 128
    %1071 = vxpose.xlu0.c.b16.cont [3/8] 0, 128
    %1072 = vxpose.xlu0.c.b16.cont [4/8] 0, 128
    %1073 = vxpose.xlu0.c.b16.cont [5/8] 0, 128
    %1074 = vxpose.xlu0.c.b16.cont [6/8] 0, 128
    %1075 = vxpose.xlu0.c.b16.cont [7/8] 0, 128
    %1076 = vxpose.xlu0.c.b16.end [8/8] 0, 128
    %v1077 = vpop.trf.xlu0
    %v1078 = vpop.trf.xlu0
    %v1079 = vpop.trf.xlu0
    %v1080 = vpop.trf.xlu0
    %v1081 = vpop.trf.xlu0
    %v1082 = vpop.trf.xlu0
    %v1083 = vpop.trf.xlu0
    %v1084 = vpop.trf.xlu0
    %v1086 = vsel %vm773, %v1077, 0
    %v1089 = vsel %vm777, %v754, 0
    %1091 = vmatprep.subr.bf16.mxu0 0
    %1092 = vmatpush1.bf16.msra.mxu0 %v1089
    %1093 = vmatprep.subr.bf16.mxu0 0
    %1094 = vmatpush1.bf16.msra.mxu0 0
    %1095 = vmatprep.subr.bf16.mxu0 0
    %1096 = vmatpush1.bf16.msra.mxu0 0
    %1097 = vmatprep.subr.bf16.mxu0 0
    %1098 = vmatpush1.bf16.msra.mxu0 0
    %1099 = vmatprep.subr.bf16.mxu0 0
    %1100 = vmatpush1.bf16.msra.mxu0 0
    %1101 = vmatprep.subr.bf16.mxu0 0
    %1102 = vmatpush1.bf16.msra.mxu0 0
    %1103 = vmatprep.subr.bf16.mxu0 0
    %1104 = vmatpush1.bf16.msra.mxu0 0
    %1105 = vmatprep.subr.bf16.mxu0 0
    %1106 = vmatpush1.bf16.msra.mxu0 0
    %1107 = vmatprep.subr.bf16.mxu0 0
    %1108 = vmatpush1.bf16.msra.mxu0 0
    %1109 = vmatprep.subr.bf16.mxu0 0
    %1110 = vmatpush1.bf16.msra.mxu0 0
    %1111 = vmatprep.subr.bf16.mxu0 0
    %1112 = vmatpush1.bf16.msra.mxu0 0
    %1113 = vmatprep.subr.bf16.mxu0 0
    %1114 = vmatpush1.bf16.msra.mxu0 0
    %1115 = vmatprep.subr.bf16.mxu0 0
    %1116 = vmatpush1.bf16.msra.mxu0 0
    %1117 = vmatprep.subr.bf16.mxu0 0
    %1118 = vmatpush1.bf16.msra.mxu0 0
    %1119 = vmatprep.subr.bf16.mxu0 0
    %1120 = vmatpush1.bf16.msra.mxu0 0
    %1121 = vmatprep.subr.bf16.mxu0 0
    %1122 = vmatpush1.bf16.msra.mxu0 0
    %1123 = vmatprep.mubr.bf16.mxu0 0
    %1124 = vmatmul.mubr.bf16.gmra.mrb[0].mxu0 %v1086
    %v1125 = vpop.f32.mrb[0].mxu0
    %v1126 = vadd.f32 0.0, %v1125
    %v1127 = vpop.f32.mrb[0].mxu0
    %v1128 = vpop.f32.mrb[0].mxu0
    %v1129 = vpop.f32.mrb[0].mxu0
    %1130 = vdwg.mxu0
    %1131 = vxpose.xlu0.c.b16.start [1/8] %v747, 128
    %1132 = vxpose.xlu0.c.b16.cont [2/8] 0, 128
    %1133 = vxpose.xlu0.c.b16.cont [3/8] 0, 128
    %1134 = vxpose.xlu0.c.b16.cont [4/8] 0, 128
    %1135 = vxpose.xlu0.c.b16.cont [5/8] 0, 128
    %1136 = vxpose.xlu0.c.b16.cont [6/8] 0, 128
    %1137 = vxpose.xlu0.c.b16.cont [7/8] 0, 128
    %1138 = vxpose.xlu0.c.b16.end [8/8] 0, 128
    %v1139 = vpop.trf.xlu0
    %v1140 = vpop.trf.xlu0
    %v1141 = vpop.trf.xlu0
    %v1142 = vpop.trf.xlu0
    %v1143 = vpop.trf.xlu0
    %v1144 = vpop.trf.xlu0
    %v1145 = vpop.trf.xlu0
    %v1146 = vpop.trf.xlu0
    %v1148 = vsel %vm773, %v1139, 0
    %v1151 = vsel %vm777, %v755, 0
    %1153 = vmatprep.subr.bf16.mxu0 0
    %1154 = vmatpush1.bf16.msra.mxu0 %v1151
    %1155 = vmatprep.subr.bf16.mxu0 0
    %1156 = vmatpush1.bf16.msra.mxu0 0
    %1157 = vmatprep.subr.bf16.mxu0 0
    %1158 = vmatpush1.bf16.msra.mxu0 0
    %1159 = vmatprep.subr.bf16.mxu0 0
    %1160 = vmatpush1.bf16.msra.mxu0 0
    %1161 = vmatprep.subr.bf16.mxu0 0
    %1162 = vmatpush1.bf16.msra.mxu0 0
    %1163 = vmatprep.subr.bf16.mxu0 0
    %1164 = vmatpush1.bf16.msra.mxu0 0
    %1165 = vmatprep.subr.bf16.mxu0 0
    %1166 = vmatpush1.bf16.msra.mxu0 0
    %1167 = vmatprep.subr.bf16.mxu0 0
    %1168 = vmatpush1.bf16.msra.mxu0 0
    %1169 = vmatprep.subr.bf16.mxu0 0
    %1170 = vmatpush1.bf16.msra.mxu0 0
    %1171 = vmatprep.subr.bf16.mxu0 0
    %1172 = vmatpush1.bf16.msra.mxu0 0
    %1173 = vmatprep.subr.bf16.mxu0 0
    %1174 = vmatpush1.bf16.msra.mxu0 0
    %1175 = vmatprep.subr.bf16.mxu0 0
    %1176 = vmatpush1.bf16.msra.mxu0 0
    %1177 = vmatprep.subr.bf16.mxu0 0
    %1178 = vmatpush1.bf16.msra.mxu0 0
    %1179 = vmatprep.subr.bf16.mxu0 0
    %1180 = vmatpush1.bf16.msra.mxu0 0
    %1181 = vmatprep.subr.bf16.mxu0 0
    %1182 = vmatpush1.bf16.msra.mxu0 0
    %1183 = vmatprep.subr.bf16.mxu0 0
    %1184 = vmatpush1.bf16.msra.mxu0 0
    %1185 = vmatprep.mubr.bf16.mxu0 0
    %1186 = vmatmul.mubr.bf16.gmra.mrb[0].mxu0 %v1148
    %v1187 = vpop.f32.mrb[0].mxu0
    %v1188 = vadd.f32 0.0, %v1187
    %v1189 = vpop.f32.mrb[0].mxu0
    %v1190 = vpop.f32.mrb[0].mxu0
    %v1191 = vpop.f32.mrb[0].mxu0
    %1192 = vdwg.mxu0
    %1193 = vxpose.xlu0.c.b16.start [1/8] %v748, 128
    %1194 = vxpose.xlu0.c.b16.cont [2/8] 0, 128
    %1195 = vxpose.xlu0.c.b16.cont [3/8] 0, 128
    %1196 = vxpose.xlu0.c.b16.cont [4/8] 0, 128
    %1197 = vxpose.xlu0.c.b16.cont [5/8] 0, 128
    %1198 = vxpose.xlu0.c.b16.cont [6/8] 0, 128
    %1199 = vxpose.xlu0.c.b16.cont [7/8] 0, 128
    %1200 = vxpose.xlu0.c.b16.end [8/8] 0, 128
    %v1201 = vpop.trf.xlu0
    %v1202 = vpop.trf.xlu0
    %v1203 = vpop.trf.xlu0
    %v1204 = vpop.trf.xlu0
    %v1205 = vpop.trf.xlu0
    %v1206 = vpop.trf.xlu0
    %v1207 = vpop.trf.xlu0
    %v1208 = vpop.trf.xlu0
    %v1210 = vsel %vm773, %v1201, 0
    %v1213 = vsel %vm777, %v756, 0
    %1215 = vmatprep.subr.bf16.mxu0 0
    %1216 = vmatpush1.bf16.msra.mxu0 %v1213
    %1217 = vmatprep.subr.bf16.mxu0 0
    %1218 = vmatpush1.bf16.msra.mxu0 0
    %1219 = vmatprep.subr.bf16.mxu0 0
    %1220 = vmatpush1.bf16.msra.mxu0 0
    %1221 = vmatprep.subr.bf16.mxu0 0
    %1222 = vmatpush1.bf16.msra.mxu0 0
    %1223 = vmatprep.subr.bf16.mxu0 0
    %1224 = vmatpush1.bf16.msra.mxu0 0
    %1225 = vmatprep.subr.bf16.mxu0 0
    %1226 = vmatpush1.bf16.msra.mxu0 0
    %1227 = vmatprep.subr.bf16.mxu0 0
    %1228 = vmatpush1.bf16.msra.mxu0 0
    %1229 = vmatprep.subr.bf16.mxu0 0
    %1230 = vmatpush1.bf16.msra.mxu0 0
    %1231 = vmatprep.subr.bf16.mxu0 0
    %1232 = vmatpush1.bf16.msra.mxu0 0
    %1233 = vmatprep.subr.bf16.mxu0 0
    %1234 = vmatpush1.bf16.msra.mxu0 0
    %1235 = vmatprep.subr.bf16.mxu0 0
    %1236 = vmatpush1.bf16.msra.mxu0 0
    %1237 = vmatprep.subr.bf16.mxu0 0
    %1238 = vmatpush1.bf16.msra.mxu0 0
    %1239 = vmatprep.subr.bf16.mxu0 0
    %1240 = vmatpush1.bf16.msra.mxu0 0
    %1241 = vmatprep.subr.bf16.mxu0 0
    %1242 = vmatpush1.bf16.msra.mxu0 0
    %1243 = vmatprep.subr.bf16.mxu0 0
    %1244 = vmatpush1.bf16.msra.mxu0 0
    %1245 = vmatprep.subr.bf16.mxu0 0
    %1246 = vmatpush1.bf16.msra.mxu0 0
    %1247 = vmatprep.mubr.bf16.mxu0 0
    %1248 = vmatmul.mubr.bf16.gmra.mrb[0].mxu0 %v1210
    %v1249 = vpop.f32.mrb[0].mxu0
    %v1250 = vadd.f32 0.0, %v1249
    %v1251 = vpop.f32.mrb[0].mxu0
    %v1252 = vpop.f32.mrb[0].mxu0
    %v1253 = vpop.f32.mrb[0].mxu0
    %1254 = vdwg.mxu0
    %v1255 = vld [vmem:[%s11] sm:$0xf]
    %v1256 = vmul.f32 %v816, %v1255
    %v1257 = vmul.f32 %v878, %v1255
    %v1258 = vmul.f32 %v940, %v1255
    %v1259 = vmul.f32 %v1002, %v1255
    %v1260 = vmul.f32 %v1064, %v1255
    %v1261 = vmul.f32 %v1126, %v1255
    %v1262 = vmul.f32 %v1188, %v1255
    %v1263 = vmul.f32 %v1250, %v1255
    %vm1264 = vcmask 257024
    %v1265 = vsel %vm1264, %v1256, 0.0
    %v1266 = vrot.slane %v1265, 4
    %v1267 = vadd.f32 %v1265, %v1266
    %v1268 = vrot.slane %v1267, 2
    %v1269 = vadd.f32 %v1267, %v1268
    %v1270 = vrot.slane %v1269, 1
    %v1271 = vadd.f32 %v1269, %v1270
    %v1272 = vsel %vm1264, %v1257, 0.0
    %v1273 = vrot.slane %v1272, 4
    %v1274 = vadd.f32 %v1272, %v1273
    %v1275 = vrot.slane %v1274, 2
    %v1276 = vadd.f32 %v1274, %v1275
    %v1277 = vrot.slane %v1276, 1
    %v1278 = vadd.f32 %v1276, %v1277
    %v1279 = vsel %vm1264, %v1258, 0.0
    %v1280 = vrot.slane %v1279, 4
    %v1281 = vadd.f32 %v1279, %v1280
    %v1282 = vrot.slane %v1281, 2
    %v1283 = vadd.f32 %v1281, %v1282
    %v1284 = vrot.slane %v1283, 1
    %v1285 = vadd.f32 %v1283, %v1284
    %v1286 = vsel %vm1264, %v1259, 0.0
    %v1287 = vrot.slane %v1286, 4
    %v1288 = vadd.f32 %v1286, %v1287
    %v1289 = vrot.slane %v1288, 2
    %v1290 = vadd.f32 %v1288, %v1289
    %v1291 = vrot.slane %v1290, 1
    %v1292 = vadd.f32 %v1290, %v1291
    %v1293 = vsel %vm1264, %v1260, 0.0
    %v1294 = vrot.slane %v1293, 4
    %v1295 = vadd.f32 %v1293, %v1294
    %v1296 = vrot.slane %v1295, 2
    %v1297 = vadd.f32 %v1295, %v1296
    %v1298 = vrot.slane %v1297, 1
    %v1299 = vadd.f32 %v1297, %v1298
    %v1300 = vsel %vm1264, %v1261, 0.0
    %v1301 = vrot.slane %v1300, 4
    %v1302 = vadd.f32 %v1300, %v1301
    %v1303 = vrot.slane %v1302, 2
    %v1304 = vadd.f32 %v1302, %v1303
    %v1305 = vrot.slane %v1304, 1
    %v1306 = vadd.f32 %v1304, %v1305
    %v1307 = vsel %vm1264, %v1262, 0.0
    %v1308 = vrot.slane %v1307, 4
    %v1309 = vadd.f32 %v1307, %v1308
    %v1310 = vrot.slane %v1309, 2
    %v1311 = vadd.f32 %v1309, %v1310
    %v1312 = vrot.slane %v1311, 1
    %v1313 = vadd.f32 %v1311, %v1312
    %v1314 = vsel %vm1264, %v1263, 0.0
    %v1315 = vrot.slane %v1314, 4
    %v1316 = vadd.f32 %v1314, %v1315
    %v1317 = vrot.slane %v1316, 2
    %v1318 = vadd.f32 %v1316, %v1317
    %v1319 = vrot.slane %v1318, 1
    %v1320 = vadd.f32 %v1318, %v1319
    %vm1329 = vcmask 1041409
    %v1330 = vsel %vm1329, %v698, %v691
    %vm1331 = vcmask 1042434
    %v1332 = vsel %vm1331, %v705, %v1330
    %vm1333 = vcmask 1043459
    %v1334 = vsel %vm1333, %v712, %v1332
    %vm1335 = vcmask 1044484
    %v1336 = vsel %vm1335, %v719, %v1334
    %vm1337 = vcmask 1045509
    %v1338 = vsel %vm1337, %v726, %v1336
    %vm1339 = vcmask 1046534
    %v1340 = vsel %vm1339, %v733, %v1338
    %vm1341 = vcmask 1047559
    %v1342 = vsel %vm1341, %v740, %v1340
    %v1343 = vsel %vm604, %v1342, 0
    %v1346 = vsel %vm777, %v1255, 0
    %1348 = vmatprep.subr.mxu0 0.0
    %1349 = vmatpush1.msra.mxu0 %v1346
    %1350 = vmatprep.subr.mxu0 0.0
    %1351 = vmatpush1.msra.mxu0 0.0
    %1352 = vmatprep.subr.mxu0 0.0
    %1353 = vmatpush1.msra.mxu0 0.0
    %1354 = vmatprep.subr.mxu0 0.0
    %1355 = vmatpush1.msra.mxu0 0.0
    %1356 = vmatprep.subr.mxu0 0.0
    %1357 = vmatpush1.msra.mxu0 0.0
    %1358 = vmatprep.subr.mxu0 0.0
    %1359 = vmatpush1.msra.mxu0 0.0
    %1360 = vmatprep.subr.mxu0 0.0
    %1361 = vmatpush1.msra.mxu0 0.0
    %1362 = vmatprep.subr.mxu0 0.0
    %1363 = vmatpush1.msra.mxu0 0.0
    %1364 = vmatprep.subr.mxu0 0.0
    %1365 = vmatpush1.msra.mxu0 0.0
    %1366 = vmatprep.subr.mxu0 0.0
    %1367 = vmatpush1.msra.mxu0 0.0
    %1368 = vmatprep.subr.mxu0 0.0
    %1369 = vmatpush1.msra.mxu0 0.0
    %1370 = vmatprep.subr.mxu0 0.0
    %1371 = vmatpush1.msra.mxu0 0.0
    %1372 = vmatprep.subr.mxu0 0.0
    %1373 = vmatpush1.msra.mxu0 0.0
    %1374 = vmatprep.subr.mxu0 0.0
    %1375 = vmatpush1.msra.mxu0 0.0
    %1376 = vmatprep.subr.mxu0 0.0
    %1377 = vmatpush1.msra.mxu0 0.0
    %1378 = vmatprep.subr.mxu0 0.0
    %1379 = vmatpush1.msra.mxu0 0.0
    %1380 = vmatprep.subr.mxu0 0.0
    %1381 = vmatpush1.msra.mxu0 0.0
    %1382 = vmatprep.subr.mxu0 0.0
    %1383 = vmatpush1.msra.mxu0 0.0
    %1384 = vmatprep.subr.mxu0 0.0
    %1385 = vmatpush1.msra.mxu0 0.0
    %1386 = vmatprep.subr.mxu0 0.0
    %1387 = vmatpush1.msra.mxu0 0.0
    %1388 = vmatprep.subr.mxu0 0.0
    %1389 = vmatpush1.msra.mxu0 0.0
    %1390 = vmatprep.subr.mxu0 0.0
    %1391 = vmatpush1.msra.mxu0 0.0
    %1392 = vmatprep.subr.mxu0 0.0
    %1393 = vmatpush1.msra.mxu0 0.0
    %1394 = vmatprep.subr.mxu0 0.0
    %1395 = vmatpush1.msra.mxu0 0.0
    %1396 = vmatprep.subr.mxu0 0.0
    %1397 = vmatpush1.msra.mxu0 0.0
    %1398 = vmatprep.subr.mxu0 0.0
    %1399 = vmatpush1.msra.mxu0 0.0
    %1400 = vmatprep.subr.mxu0 0.0
    %1401 = vmatpush1.msra.mxu0 0.0
    %1402 = vmatprep.subr.mxu0 0.0
    %1403 = vmatpush1.msra.mxu0 0.0
    %1404 = vmatprep.subr.mxu0 0.0
    %1405 = vmatpush1.msra.mxu0 0.0
    %1406 = vmatprep.subr.mxu0 0.0
    %1407 = vmatpush1.msra.mxu0 0.0
    %1408 = vmatprep.subr.mxu0 0.0
    %1409 = vmatpush1.msra.mxu0 0.0
    %1410 = vmatprep.subr.mxu0 0.0
    %1411 = vmatpush1.msra.mxu0 0.0
    %1412 = vmatprep.mubr.f32.mxu0 0.0
    %1413 = vmatmul.mubr.f32.gmra.mrb[0].mxu0 %v1343
    %v1414 = vpop.f32.mrb[0].mxu0
    %v1415 = vadd.f32 0.0, %v1414
    %v1416 = vpop.f32.mrb[0].mxu0
    %1417 = vdwg.mxu0
    %v1418 = vrcp.pop %v1415
    %v1420 = vrot.slane %v1418, 1
    %v1421 = vrot.slane %v1418, 2
    %v1422 = vrot.slane %v1418, 3
    %v1423 = vrot.slane %v1418, 4
    %v1424 = vrot.slane %v1418, 5
    %v1425 = vrot.slane %v1418, 6
    %v1426 = vrot.slane %v1418, 7
    %v1435 = vmul.f32 %v1271, %v1418
    %v1436 = vmul.f32 %v1278, %v1420
    %v1437 = vmul.f32 %v1285, %v1421
    %v1438 = vmul.f32 %v1292, %v1422
    %v1439 = vmul.f32 %v1299, %v1423
    %v1440 = vmul.f32 %v1306, %v1424
    %v1441 = vmul.f32 %v1313, %v1425
    %v1442 = vmul.f32 %v1320, %v1426
    %v1443 = vpack.c.bf16 %v1435, %v1435
    %v1444 = vpack.c.bf16 %v1436, %v1436
    %v1445 = vpack.c.bf16 %v1437, %v1437
    %v1446 = vpack.c.bf16 %v1438, %v1438
    %v1447 = vpack.c.bf16 %v1439, %v1439
    %v1448 = vpack.c.bf16 %v1440, %v1440
    %v1449 = vpack.c.bf16 %v1441, %v1441
    %v1450 = vpack.c.bf16 %v1442, %v1442
    %v1451 = vld [vmem:[%s8] sm:$0xf]
    %v1452 = vld [vmem:[%s8 + $0x4] sm:$0xf]
    %v1453 = vld [vmem:[%s8 + $0x8] sm:$0xf]
    %v1454 = vld [vmem:[%s8 + $0xc] sm:$0xf]
    %v1455 = vld [vmem:[#allocation10] sm:$0x1]
    %v1457 = vlaneseq
    %v1458 = vshrl.u32 %v1457, 7
    %v1459 = vsub.s32 0, %v1458
    %v1460 = vrot.slane %v1455, %v1459
    %v1470 = vunpack.c.l.b16 %v1443
    %v1471 = vunpack.c.l.b16 %v1444
    %v1472 = vunpack.c.l.b16 %v1445
    %v1473 = vunpack.c.l.b16 %v1446
    %v1474 = vunpack.c.l.b16 %v1447
    %v1475 = vunpack.c.l.b16 %v1448
    %v1476 = vunpack.c.l.b16 %v1449
    %v1477 = vunpack.c.l.b16 %v1450
    %v1478 = vrot.slane %v1471, 7
    %v1479 = vsel %vm1329, %v1478, %v1470
    %v1480 = vrot.slane %v1472, 6
    %v1481 = vsel %vm1331, %v1480, %v1479
    %v1482 = vrot.slane %v1473, 5
    %v1483 = vsel %vm1333, %v1482, %v1481
    %v1484 = vrot.slane %v1474, 4
    %v1485 = vsel %vm1335, %v1484, %v1483
    %v1486 = vrot.slane %v1475, 3
    %v1487 = vsel %vm1337, %v1486, %v1485
    %v1488 = vrot.slane %v1476, 2
    %v1489 = vsel %vm1339, %v1488, %v1487
    %v1490 = vrot.slane %v1477, 1
    %v1491 = vsel %vm1341, %v1490, %v1489
    %v1492 = vpack.c.b16 %v1491, %v1491
    %v1497 = vunpack.c.l.b16 %v1451
    %v1498 = vunpack.c.l.b16 %v1452
    %v1499 = vunpack.c.l.b16 %v1453
    %v1500 = vunpack.c.l.b16 %v1454
    %v1501 = vpack.c.b16 %v1498, %v1497
    %v1502 = vpack.c.b16 %v1500, %v1499
    %v1506 = vsel %vm128, %v1492, 0
    %1508 = vmatprep.subr.bf16.mxu0 0
    %1509 = vmatpush1.bf16.msra.mxu0 %v1501
    %1510 = vmatprep.subr.bf16.mxu0 0
    %1511 = vmatpush1.bf16.msra.mxu0 %v1502
    %1512 = vmatprep.subr.bf16.mxu0 0
    %1513 = vmatpush1.bf16.msra.mxu0 0
    %1514 = vmatprep.subr.bf16.mxu0 0
    %1515 = vmatpush1.bf16.msra.mxu0 0
    %1516 = vmatprep.subr.bf16.mxu0 0
    %1517 = vmatpush1.bf16.msra.mxu0 0
    %1518 = vmatprep.subr.bf16.mxu0 0
    %1519 = vmatpush1.bf16.msra.mxu0 0
    %1520 = vmatprep.subr.bf16.mxu0 0
    %1521 = vmatpush1.bf16.msra.mxu0 0
    %1522 = vmatprep.subr.bf16.mxu0 0
    %1523 = vmatpush1.bf16.msra.mxu0 0
    %1524 = vmatprep.subr.bf16.mxu0 0
    %1525 = vmatpush1.bf16.msra.mxu0 0
    %1526 = vmatprep.subr.bf16.mxu0 0
    %1527 = vmatpush1.bf16.msra.mxu0 0
    %1528 = vmatprep.subr.bf16.mxu0 0
    %1529 = vmatpush1.bf16.msra.mxu0 0
    %1530 = vmatprep.subr.bf16.mxu0 0
    %1531 = vmatpush1.bf16.msra.mxu0 0
    %1532 = vmatprep.subr.bf16.mxu0 0
    %1533 = vmatpush1.bf16.msra.mxu0 0
    %1534 = vmatprep.subr.bf16.mxu0 0
    %1535 = vmatpush1.bf16.msra.mxu0 0
    %1536 = vmatprep.subr.bf16.mxu0 0
    %1537 = vmatpush1.bf16.msra.mxu0 0
    %1538 = vmatprep.subr.bf16.mxu0 0
    %1539 = vmatpush1.bf16.msra.mxu0 0
    %1540 = vmatprep.mubr.bf16.mxu0 0
    %1541 = vmatmul.mubr.bf16.gmra.mrb[0].mxu0 %v1506
    %v1542 = vpop.f32.mrb[0].mxu0
    %v1543 = vadd.f32 %v1460, %v1542
    %v1544 = vpop.f32.mrb[0].mxu0
    %v1545 = vpop.f32.mrb[0].mxu0
    %v1546 = vpop.f32.mrb[0].mxu0
    %1547 = vdwg.mxu0
    %1548 = vst.msk [vmem:[#allocation11] sm:$0xff] %vm128, %v1543
    // Predicated region
    $region70: #{tpu_custom_call.1} parent=1 // pred_check
      _
    $region71: #{tpu_custom_call.1} parent=1 // pred_check_branch
      %1550 = sbr.rel (0) target = $region73
    $region72: #{tpu_custom_call.1} parent=1 // pred_region
      %s1552 = ssub.s32 128, 128
      %1553 = vsyncadd [#allocation4], %s1552
      %s1555 = sshll.u32 [#allocation11], 4
      %s1556 = int_to_ptr.vmem [resolvable:$true] %s1555
      %1558 = dma.vmem_to_hbm [thread:$0]  %s1556, 128, %s12, [#allocation4]
    $region73: #{tpu_custom_call.1} parent=1 // pred_fallthru
      _
    // Predicated region
    $region74: #{tpu_custom_call.1} parent=1 // pred_check
      _
    $region75: #{tpu_custom_call.1} parent=1 // pred_check_branch
      %1560 = sbr.rel (0) target = $region77
    $region76: #{tpu_custom_call.1} parent=1 // pred_region
      %1561 = dma.done [#allocation4], 128
    $region77: #{tpu_custom_call.1} parent=1 // pred_fallthru
      _
    %1562 = vsyncpa [#allocation3], 1
    %1563 = vsyncpa [#allocation6], 1
    %1564 = vsyncpa [#allocation9], 1
    %1565 = vsyncpa [#allocation4], 1

</llo_original>
